<compile_context>
chip_gen: v5e
topology: v5e:2x2
jax: 0.10.0
libtpu: 0.0.40
codegen_flags: <defaults>
</compile_context>

<pallas_src>
import jax
import jax.numpy as jnp
from jax.experimental import pallas as pl
from jax.experimental.pallas import tpu as pltpu


def _act_kernel_unrolled(freqs_ref, phases_ref,        # SMEM, shape (F,)
                         x_ref, aux_ref, bias_ref,     # VMEM
                         o_ref):
    """Per-frequency dots, statically unrolled over F (used when D % 128 != 0)."""
    num_freqs = freqs_ref.shape[0]
    x = x_ref[...].astype(jnp.float32)                          # (tile_n, D)
    acc = jnp.zeros(o_ref.shape, jnp.float32)                   # (tile_n, tile_o)
    for f in range(num_freqs):                                  # static unroll, F is small
        feat = jnp.sin(freqs_ref[f] * x + phases_ref[f])        # (tile_n, D)
        acc = acc + jnp.dot(feat, aux_ref[f],                   # (D, tile_o)
                            preferred_element_type=jnp.float32)
    o_ref[...] = (acc + bias_ref[...]).astype(o_ref.dtype)


def _act_kernel_fused(freqs_ref, phases_ref,
                      x_ref, aux_ref, bias_ref,
                      o_ref, feat_ref):
    """Frequencies fused into the matmul K dimension (used when D % 128 == 0,
    so the slab writes are lane-aligned)."""
    num_freqs = freqs_ref.shape[0]
    d = x_ref.shape[-1]
    x = x_ref[...].astype(jnp.float32)
    for f in range(num_freqs):                                  # static, lane-aligned slabs
        feat_ref[:, f * d:(f + 1) * d] = jnp.sin(freqs_ref[f] * x + phases_ref[f])
    o_ref[...] = (jnp.dot(feat_ref[...], aux_ref[...],
                          preferred_element_type=jnp.float32)
                  + bias_ref[...]).astype(o_ref.dtype)


def act_layer_forward(x, params, *, freq_scaling=True, freq_scaling_eps=1e-3,
                      tile_n=None, tile_o=None):
    freqs = params["freqs"].astype(jnp.float32)    # (F,)
    phases = params["phases"].astype(jnp.float32)  # (F,)
    beta = params["beta"].astype(jnp.float32)      # (F, O)
    lamb = params["lamb"].astype(jnp.float32)      # (D, O)
    bias = params["bias"].astype(jnp.float32)      # (O,)

    N, D = x.shape
    F = freqs.shape[0]
    O = lamb.shape[1]

    # ---- tile selection ------------------------------------------------------
    if tile_n is None:
        tile_n = N
        for cand in (512, 256, 128, 64, 32, 16, 8):
            if N % cand == 0:
                tile_n = cand
                break
    assert N % tile_n == 0, "N must be a multiple of tile_n"
    # TODO(synk): ragged batches (N not a multiple of tile_n) need a masked tail tile.

    if tile_o is None:
        if O % 128 == 0 and O > 512:
            tile_o = 512 if O % 512 == 0 else (256 if O % 256 == 0 else 128)
        else:
            tile_o = O
    assert O % tile_o == 0 and (tile_o == O or tile_o % 128 == 0)

    n_tiles = N // tile_n
    o_tiles = O // tile_o
    fuse_k = (D % 128 == 0)    # large-K fusion only when slab writes stay lane-aligned

    # ---- fold the analytic N(0,1) normalization into the parameters ---------
    # (O(F*D*O) parameter-only work, done once in plain JAX glue.)
    mean = jnp.exp(-0.5 * freqs ** 2) * jnp.sin(phases)
    var = 0.5 - 0.5 * jnp.exp(-2.0 * freqs ** 2) * jnp.cos(2.0 * phases) - mean ** 2
    if freq_scaling:
        inv_std = 1.0 / jnp.sqrt(freq_scaling_eps + var)
    else:
        mean = jnp.zeros_like(mean)
        inv_std = jnp.ones_like(mean)

    beta_s = beta * inv_std[:, None]                              # (F, O)
    aux = beta_s[:, None, :] * lamb[None, :, :]                   # (F, D, O)
    bias_eff = bias - jnp.sum(mean[:, None] * beta_s, axis=0) * jnp.sum(lamb, axis=0)
    bias2d = bias_eff.reshape(1, O)
    if fuse_k:
        aux = aux.reshape(F * D, O)                               # K index = f*D + d

    # ---- specs ---------------------------------------------------------------
    smem = pltpu.MemorySpace.SMEM
    vmem = pltpu.MemorySpace.VMEM

    if o_tiles == 1:
        # Constant operands: whole-array, single-buffered VMEM residents.
        aux_spec = pl.BlockSpec(memory_space=vmem)
        bias_spec = pl.BlockSpec(memory_space=vmem)
    else:
        if fuse_k:
            aux_spec = pl.BlockSpec((F * D, tile_o), lambda i, j: (0, j))
        else:
            aux_spec = pl.BlockSpec((F, D, tile_o), lambda i, j: (0, 0, j))
        bias_spec = pl.BlockSpec((1, tile_o), lambda i, j: (0, j))

    in_specs = [
        pl.BlockSpec(memory_space=smem),                          # freqs
        pl.BlockSpec(memory_space=smem),                          # phases
        pl.BlockSpec((tile_n, D), lambda i, j: (i, 0)),           # x tile (resident across j)
        aux_spec,                                                 # lamb*beta*inv_std, fused
        bias_spec,                                                # bias with mean fold
    ]
    out_spec = pl.BlockSpec((tile_n, tile_o), lambda i, j: (i, j))

    if fuse_k:
        kernel = _act_kernel_fused
        scratch_shapes = [pltpu.VMEM((tile_n, F * D), jnp.float32)]
    else:
        kernel = _act_kernel_unrolled
        scratch_shapes = []

    # ---- VMEM budget: pipelined tiles double-buffered, constants single ------
    itemsize = jnp.dtype(x.dtype).itemsize
    need = (2 * tile_n * D * itemsize                             # x
            + 2 * tile_n * tile_o * itemsize                      # out
            + (1 if o_tiles == 1 else 2) * F * D * tile_o * 4     # aux
            + 2 * tile_o * 4                                      # bias
            + (tile_n * F * D * 4 if fuse_k else 0))              # feat slab scratch
    vmem_limit = int(min(max(2 * need, 32 << 20), 64 << 20))      # safe on v5e/v6e/v7x

    grid_spec = pltpu.PrefetchScalarGridSpec(
        num_scalar_prefetch=0,
        grid=(n_tiles, o_tiles),
        in_specs=in_specs,
        out_specs=out_spec,
        scratch_shapes=scratch_shapes,
    )

    return pl.pallas_call(
        kernel,
        out_shape=jax.ShapeDtypeStruct((N, O), x.dtype),
        grid_spec=grid_spec,
        compiler_params=pltpu.CompilerParams(
            dimension_semantics=("parallel", "parallel"),
            vmem_limit_bytes=vmem_limit),
    )(freqs, phases, x, aux, bias2d)


def init_act_layer_params(key, in_dim, out_dim, num_freqs):
    """Deterministic synthetic init mirroring the module's parameter shapes."""
    kf, kb, kl, kbias = jax.random.split(key, 4)
    # freqs ~ N(0, 1) (nn.init.normal_ default), phases = 0.
    freqs = jax.random.normal(kf, (num_freqs,), dtype=jnp.float32)
    phases = jnp.zeros((num_freqs,), dtype=jnp.float32)
    # variance_scaling(scale=1, fan_in, uniform): bound = sqrt(3 / fan_in)
    # (PyTorch fan_in for a 2-D tensor is its second dim).
    beta_bound = (3.0 / out_dim) ** 0.5
    beta = jax.random.uniform(kb, (num_freqs, out_dim), dtype=jnp.float32,
                              minval=-beta_bound, maxval=beta_bound)
    lamb_bound = (3.0 / out_dim) ** 0.5
    lamb = jax.random.uniform(kl, (in_dim, out_dim), dtype=jnp.float32,
                              minval=-lamb_bound, maxval=lamb_bound)
    # bias_init defaults to zeros; use small random values to exercise the add path.
    bias = 0.1 * jax.random.normal(kbias, (out_dim,), dtype=jnp.float32)
    return dict(freqs=freqs, phases=phases, beta=beta, lamb=lamb, bias=bias)


def act_layer_reference(x, params, *, freq_scaling=True, freq_scaling_eps=1e-3):
    """Pure-JAX transcription of the PyTorch forward (for correctness check)."""
    freqs = params["freqs"][None, None, :]
    phases = params["phases"][None, None, :]
    beta = params["beta"]
    lamb = params["lamb"]
    bias = params["bias"]
    N = x.shape[0]
    out_dim = lamb.shape[1]

    xf = jnp.sin(freqs * x[:, :, None] + phases)                      # (N, D, F)
    if freq_scaling:
        mean = jnp.exp(-0.5 * (1.0 * freqs) ** 2) * jnp.sin(phases + 0.0 * freqs)
        var = (0.5 - 0.5 * jnp.exp(-2.0 * (1.0 * freqs) ** 2)
               * jnp.cos(2.0 * (phases + 0.0 * freqs)) - mean ** 2)
        xf = (xf - mean) / jnp.sqrt(freq_scaling_eps + var)
    aux = jnp.matmul(lamb.T[..., None], beta.T[:, None, :])           # (O, D, F)
    aux = aux.reshape(out_dim, -1).T                                  # (D*F, O)
    y = jnp.matmul(xf.reshape(N, -1), aux) + bias
    return y


if __name__ == "__main__":
    N, in_dim, num_freqs, out_dim = 8, 4, 8, 16

    key = jax.random.PRNGKey(0)
    kx, kp = jax.random.split(key)
    x = jax.random.normal(kx, (N, in_dim), dtype=jnp.float32)
    params = init_act_layer_params(kp, in_dim, out_dim, num_freqs)

    y = act_layer_forward(x, params)
    y = jax.block_until_ready(y)

    y_ref = act_layer_reference(x, params)
    assert y.shape == (N, out_dim)
    assert jnp.allclose(y, y_ref, rtol=1e-5, atol=1e-4), (
        f"max abs err {jnp.max(jnp.abs(y - y_ref))}")

    print("KERNEL_OK")
</pallas_src>

<mosaic_0001>
module attributes {stable_mosaic.version = 11 : i64} {
  func.func @_act_kernel_unrolled(%arg0: i32, %arg1: i32, %arg2: memref<8xf32, #tpu.memory_space<smem>>, %arg3: memref<8xf32, #tpu.memory_space<smem>>, %arg4: memref<8x4xf32, #tpu.memory_space<vmem>>, %arg5: memref<8x4x16xf32, #tpu.memory_space<vmem>>, %arg6: memref<1x16xf32, #tpu.memory_space<vmem>>, %arg7: memref<8x16xf32, #tpu.memory_space<vmem>>) attributes {dimension_semantics = [#tpu.dimension_semantics<parallel>, #tpu.dimension_semantics<parallel>], iteration_bounds = array<i64: 1, 1>, scalar_prefetch = 0 : i64, scratch_operands = 0 : i64, tpu.core_type = #tpu.core_type<tc>, window_params = [{transform_indices = @transform_0, window_bounds = array<i64: 8>}, {transform_indices = @transform_1, window_bounds = array<i64: 8>}, {transform_indices = @transform_2, window_bounds = array<i64: 8, 4>}, {pipeline_mode = #tpu.pipeline_mode<synchronous>, transform_indices = @transform_3, window_bounds = array<i64: 8, 4, 16>}, {pipeline_mode = #tpu.pipeline_mode<synchronous>, transform_indices = @transform_4, window_bounds = array<i64: 1, 16>}, {transform_indices = @transform_5, window_bounds = array<i64: 8, 16>}]} {
    %c0 = arith.constant 0 : index
    %c0_0 = arith.constant 0 : index
    %0 = vector.load %arg4[%c0, %c0_0] : memref<8x4xf32, #tpu.memory_space<vmem>>, vector<8x4xf32>
    %cst = arith.constant 0.000000e+00 : f32
    %1 = vector.broadcast %cst : f32 to vector<8x16xf32>
    %c0_1 = arith.constant 0 : index
    %2 = memref.load %arg2[%c0_1] : memref<8xf32, #tpu.memory_space<smem>>
    %3 = vector.broadcast %2 : f32 to vector<8x4xf32>
    %4 = arith.mulf %3, %0 : vector<8x4xf32>
    %c0_2 = arith.constant 0 : index
    %5 = memref.load %arg3[%c0_2] : memref<8xf32, #tpu.memory_space<smem>>
    %6 = vector.broadcast %5 : f32 to vector<8x4xf32>
    %7 = arith.addf %4, %6 : vector<8x4xf32>
    %8 = math.sin %7 : vector<8x4xf32>
    %c0_3 = arith.constant 0 : index
    %c0_4 = arith.constant 0 : index
    %c0_5 = arith.constant 0 : index
    %9 = vector.load %arg5[%c0_3, %c0_4, %c0_5] : memref<8x4x16xf32, #tpu.memory_space<vmem>>, vector<1x4x16xf32>
    %10 = vector.shape_cast %9 : vector<1x4x16xf32> to vector<4x16xf32>
    %cst_6 = arith.constant dense<0.000000e+00> : vector<8x16xf32>
    %11 = tpu.matmul %8, %10, %cst_6 {dimension_numbers = #tpu.dot_dimension_numbers<[1], [0], [0], [1], [0, 0, 1, 1], [], []>} : vector<8x4xf32>, vector<4x16xf32>, vector<8x16xf32> -> vector<8x16xf32>
    %12 = arith.addf %1, %11 : vector<8x16xf32>
    %c1 = arith.constant 1 : index
    %13 = memref.load %arg2[%c1] : memref<8xf32, #tpu.memory_space<smem>>
    %14 = vector.broadcast %13 : f32 to vector<8x4xf32>
    %15 = arith.mulf %14, %0 : vector<8x4xf32>
    %c1_7 = arith.constant 1 : index
    %16 = memref.load %arg3[%c1_7] : memref<8xf32, #tpu.memory_space<smem>>
    %17 = vector.broadcast %16 : f32 to vector<8x4xf32>
    %18 = arith.addf %15, %17 : vector<8x4xf32>
    %19 = math.sin %18 : vector<8x4xf32>
    %c1_8 = arith.constant 1 : index
    %c0_9 = arith.constant 0 : index
    %c0_10 = arith.constant 0 : index
    %20 = vector.load %arg5[%c1_8, %c0_9, %c0_10] : memref<8x4x16xf32, #tpu.memory_space<vmem>>, vector<1x4x16xf32>
    %21 = vector.shape_cast %20 : vector<1x4x16xf32> to vector<4x16xf32>
    %cst_11 = arith.constant dense<0.000000e+00> : vector<8x16xf32>
    %22 = tpu.matmul %19, %21, %cst_11 {dimension_numbers = #tpu.dot_dimension_numbers<[1], [0], [0], [1], [0, 0, 1, 1], [], []>} : vector<8x4xf32>, vector<4x16xf32>, vector<8x16xf32> -> vector<8x16xf32>
    %23 = arith.addf %12, %22 : vector<8x16xf32>
    %c2 = arith.constant 2 : index
    %24 = memref.load %arg2[%c2] : memref<8xf32, #tpu.memory_space<smem>>
    %25 = vector.broadcast %24 : f32 to vector<8x4xf32>
    %26 = arith.mulf %25, %0 : vector<8x4xf32>
    %c2_12 = arith.constant 2 : index
    %27 = memref.load %arg3[%c2_12] : memref<8xf32, #tpu.memory_space<smem>>
    %28 = vector.broadcast %27 : f32 to vector<8x4xf32>
    %29 = arith.addf %26, %28 : vector<8x4xf32>
    %30 = math.sin %29 : vector<8x4xf32>
    %c2_13 = arith.constant 2 : index
    %c0_14 = arith.constant 0 : index
    %c0_15 = arith.constant 0 : index
    %31 = vector.load %arg5[%c2_13, %c0_14, %c0_15] : memref<8x4x16xf32, #tpu.memory_space<vmem>>, vector<1x4x16xf32>
    %32 = vector.shape_cast %31 : vector<1x4x16xf32> to vector<4x16xf32>
    %cst_16 = arith.constant dense<0.000000e+00> : vector<8x16xf32>
    %33 = tpu.matmul %30, %32, %cst_16 {dimension_numbers = #tpu.dot_dimension_numbers<[1], [0], [0], [1], [0, 0, 1, 1], [], []>} : vector<8x4xf32>, vector<4x16xf32>, vector<8x16xf32> -> vector<8x16xf32>
    %34 = arith.addf %23, %33 : vector<8x16xf32>
    %c3 = arith.constant 3 : index
    %35 = memref.load %arg2[%c3] : memref<8xf32, #tpu.memory_space<smem>>
    %36 = vector.broadcast %35 : f32 to vector<8x4xf32>
    %37 = arith.mulf %36, %0 : vector<8x4xf32>
    %c3_17 = arith.constant 3 : index
    %38 = memref.load %arg3[%c3_17] : memref<8xf32, #tpu.memory_space<smem>>
    %39 = vector.broadcast %38 : f32 to vector<8x4xf32>
    %40 = arith.addf %37, %39 : vector<8x4xf32>
    %41 = math.sin %40 : vector<8x4xf32>
    %c3_18 = arith.constant 3 : index
    %c0_19 = arith.constant 0 : index
    %c0_20 = arith.constant 0 : index
    %42 = vector.load %arg5[%c3_18, %c0_19, %c0_20] : memref<8x4x16xf32, #tpu.memory_space<vmem>>, vector<1x4x16xf32>
    %43 = vector.shape_cast %42 : vector<1x4x16xf32> to vector<4x16xf32>
    %cst_21 = arith.constant dense<0.000000e+00> : vector<8x16xf32>
    %44 = tpu.matmul %41, %43, %cst_21 {dimension_numbers = #tpu.dot_dimension_numbers<[1], [0], [0], [1], [0, 0, 1, 1], [], []>} : vector<8x4xf32>, vector<4x16xf32>, vector<8x16xf32> -> vector<8x16xf32>
    %45 = arith.addf %34, %44 : vector<8x16xf32>
    %c4 = arith.constant 4 : index
    %46 = memref.load %arg2[%c4] : memref<8xf32, #tpu.memory_space<smem>>
    %47 = vector.broadcast %46 : f32 to vector<8x4xf32>
    %48 = arith.mulf %47, %0 : vector<8x4xf32>
    %c4_22 = arith.constant 4 : index
    %49 = memref.load %arg3[%c4_22] : memref<8xf32, #tpu.memory_space<smem>>
    %50 = vector.broadcast %49 : f32 to vector<8x4xf32>
    %51 = arith.addf %48, %50 : vector<8x4xf32>
    %52 = math.sin %51 : vector<8x4xf32>
    %c4_23 = arith.constant 4 : index
    %c0_24 = arith.constant 0 : index
    %c0_25 = arith.constant 0 : index
    %53 = vector.load %arg5[%c4_23, %c0_24, %c0_25] : memref<8x4x16xf32, #tpu.memory_space<vmem>>, vector<1x4x16xf32>
    %54 = vector.shape_cast %53 : vector<1x4x16xf32> to vector<4x16xf32>
    %cst_26 = arith.constant dense<0.000000e+00> : vector<8x16xf32>
    %55 = tpu.matmul %52, %54, %cst_26 {dimension_numbers = #tpu.dot_dimension_numbers<[1], [0], [0], [1], [0, 0, 1, 1], [], []>} : vector<8x4xf32>, vector<4x16xf32>, vector<8x16xf32> -> vector<8x16xf32>
    %56 = arith.addf %45, %55 : vector<8x16xf32>
    %c5 = arith.constant 5 : index
    %57 = memref.load %arg2[%c5] : memref<8xf32, #tpu.memory_space<smem>>
    %58 = vector.broadcast %57 : f32 to vector<8x4xf32>
    %59 = arith.mulf %58, %0 : vector<8x4xf32>
    %c5_27 = arith.constant 5 : index
    %60 = memref.load %arg3[%c5_27] : memref<8xf32, #tpu.memory_space<smem>>
    %61 = vector.broadcast %60 : f32 to vector<8x4xf32>
    %62 = arith.addf %59, %61 : vector<8x4xf32>
    %63 = math.sin %62 : vector<8x4xf32>
    %c5_28 = arith.constant 5 : index
    %c0_29 = arith.constant 0 : index
    %c0_30 = arith.constant 0 : index
    %64 = vector.load %arg5[%c5_28, %c0_29, %c0_30] : memref<8x4x16xf32, #tpu.memory_space<vmem>>, vector<1x4x16xf32>
    %65 = vector.shape_cast %64 : vector<1x4x16xf32> to vector<4x16xf32>
    %cst_31 = arith.constant dense<0.000000e+00> : vector<8x16xf32>
    %66 = tpu.matmul %63, %65, %cst_31 {dimension_numbers = #tpu.dot_dimension_numbers<[1], [0], [0], [1], [0, 0, 1, 1], [], []>} : vector<8x4xf32>, vector<4x16xf32>, vector<8x16xf32> -> vector<8x16xf32>
    %67 = arith.addf %56, %66 : vector<8x16xf32>
    %c6 = arith.constant 6 : index
    %68 = memref.load %arg2[%c6] : memref<8xf32, #tpu.memory_space<smem>>
    %69 = vector.broadcast %68 : f32 to vector<8x4xf32>
    %70 = arith.mulf %69, %0 : vector<8x4xf32>
    %c6_32 = arith.constant 6 : index
    %71 = memref.load %arg3[%c6_32] : memref<8xf32, #tpu.memory_space<smem>>
    %72 = vector.broadcast %71 : f32 to vector<8x4xf32>
    %73 = arith.addf %70, %72 : vector<8x4xf32>
    %74 = math.sin %73 : vector<8x4xf32>
    %c6_33 = arith.constant 6 : index
    %c0_34 = arith.constant 0 : index
    %c0_35 = arith.constant 0 : index
    %75 = vector.load %arg5[%c6_33, %c0_34, %c0_35] : memref<8x4x16xf32, #tpu.memory_space<vmem>>, vector<1x4x16xf32>
    %76 = vector.shape_cast %75 : vector<1x4x16xf32> to vector<4x16xf32>
    %cst_36 = arith.constant dense<0.000000e+00> : vector<8x16xf32>
    %77 = tpu.matmul %74, %76, %cst_36 {dimension_numbers = #tpu.dot_dimension_numbers<[1], [0], [0], [1], [0, 0, 1, 1], [], []>} : vector<8x4xf32>, vector<4x16xf32>, vector<8x16xf32> -> vector<8x16xf32>
    %78 = arith.addf %67, %77 : vector<8x16xf32>
    %c7 = arith.constant 7 : index
    %79 = memref.load %arg2[%c7] : memref<8xf32, #tpu.memory_space<smem>>
    %80 = vector.broadcast %79 : f32 to vector<8x4xf32>
    %81 = arith.mulf %80, %0 : vector<8x4xf32>
    %c7_37 = arith.constant 7 : index
    %82 = memref.load %arg3[%c7_37] : memref<8xf32, #tpu.memory_space<smem>>
    %83 = vector.broadcast %82 : f32 to vector<8x4xf32>
    %84 = arith.addf %81, %83 : vector<8x4xf32>
    %85 = math.sin %84 : vector<8x4xf32>
    %c7_38 = arith.constant 7 : index
    %c0_39 = arith.constant 0 : index
    %c0_40 = arith.constant 0 : index
    %86 = vector.load %arg5[%c7_38, %c0_39, %c0_40] : memref<8x4x16xf32, #tpu.memory_space<vmem>>, vector<1x4x16xf32>
    %87 = vector.shape_cast %86 : vector<1x4x16xf32> to vector<4x16xf32>
    %cst_41 = arith.constant dense<0.000000e+00> : vector<8x16xf32>
    %88 = tpu.matmul %85, %87, %cst_41 {dimension_numbers = #tpu.dot_dimension_numbers<[1], [0], [0], [1], [0, 0, 1, 1], [], []>} : vector<8x4xf32>, vector<4x16xf32>, vector<8x16xf32> -> vector<8x16xf32>
    %89 = arith.addf %78, %88 : vector<8x16xf32>
    %c0_42 = arith.constant 0 : index
    %c0_43 = arith.constant 0 : index
    %90 = vector.load %arg6[%c0_42, %c0_43] : memref<1x16xf32, #tpu.memory_space<vmem>>, vector<1x16xf32>
    %91 = vector.broadcast %90 : vector<1x16xf32> to vector<8x16xf32>
    %92 = arith.addf %89, %91 : vector<8x16xf32>
    %c0_44 = arith.constant 0 : index
    %c0_45 = arith.constant 0 : index
    %93 = vector.load %arg7[%c0_44, %c0_45] : memref<8x16xf32, #tpu.memory_space<vmem>>, vector<8x16xf32>
    tpu.vector_store %arg7[%c0_44, %c0_45], %92 {strides = array<i32>} : memref<8x16xf32, #tpu.memory_space<vmem>>, vector<8x16xf32>,
    return
  }
  func.func @transform_0(%arg0: i32, %arg1: i32) -> i32 {
    %c0_i32 = arith.constant 0 : i32
    %c0_i32_0 = arith.constant 0 : i32
    return %c0_i32 : i32
  }
  func.func @transform_1(%arg0: i32, %arg1: i32) -> i32 {
    %c0_i32 = arith.constant 0 : i32
    %c0_i32_0 = arith.constant 0 : i32
    return %c0_i32 : i32
  }
  func.func @transform_2(%arg0: i32, %arg1: i32) -> (i32, i32) {
    %c0_i32 = arith.constant 0 : i32
    %c0_i32_0 = arith.constant 0 : i32
    return %arg0, %c0_i32 : i32, i32
  }
  func.func @transform_3(%arg0: i32, %arg1: i32) -> (i32, i32, i32) {
    %c0_i32 = arith.constant 0 : i32
    %c0_i32_0 = arith.constant 0 : i32
    %c0_i32_1 = arith.constant 0 : i32
    %c0_i32_2 = arith.constant 0 : i32
    return %c0_i32, %c0_i32_0, %c0_i32_1 : i32, i32, i32
  }
  func.func @transform_4(%arg0: i32, %arg1: i32) -> (i32, i32) {
    %c0_i32 = arith.constant 0 : i32
    %c0_i32_0 = arith.constant 0 : i32
    %c0_i32_1 = arith.constant 0 : i32
    return %c0_i32, %c0_i32_0 : i32, i32
  }
  func.func @transform_5(%arg0: i32, %arg1: i32) -> (i32, i32) {
    %c0_i32 = arith.constant 0 : i32
    return %arg0, %arg1 : i32, i32
  }
}

</mosaic_0001>

<llo_original>
// kernel: tpu_custom_call.1
$region0: #{tpu_custom_call.1}
  #allocation0 [shape = 'u32[]', space=smem, size = 0x4, offset = 0x4, fixed_abs, tag = 'smem constant byte address 0x4 - core index']
  #allocation1 [shape = 'u32[72,128]{1,0:T(1,128)}', space=vmem, size = 0x9000, scoped, tag = 'internal scratch']
  %s0 = inlined_call_operand.vmem [shape: f32[8], index: 0, kind: input, shape index: {}]
  %s1 = inlined_call_operand.vmem [shape: f32[8], index: 1, kind: input, shape index: {}]
  %s2 = inlined_call_operand.vmem [shape: f32[8,4], index: 2, kind: input, shape index: {}]
  %s3 = inlined_call_operand.hbm [shape: f32[8,4,16], index: 3, kind: input, shape index: {}]
  %s4 = inlined_call_operand.vmem [shape: f32[1,16], index: 4, kind: input, shape index: {}]
  %s5 = inlined_call_operand.hbm [shape: f32[8,16], index: 5, kind: output, shape index: {}]
  %s6 = sld [smem:[#allocation0]]
  $region42: #{tpu_custom_call.1} parent=0
    _
  %s8 = ssub.s32 1, %s6
  %s9 = scalar_select 0, %s8, %s6
  $region1: #{tpu_custom_call.1} parent=0
    #allocation2 [shape = 'u8[512]{0}', space=smem, size = 0x200, scoped, tag = 'input window, operand 0, single buffered']
    #allocation3 [shape = 's32[1]{0}', space=sflag, size = 0x4, scoped, tag = 'scoped memory for tpu_custom_call.1']
    #allocation4 [shape = 's32[1]{0}', space=sflag, size = 0x4, scoped, tag = 'scoped memory for tpu_custom_call.1']
    #allocation5 [shape = 's32[1]{0}', space=sflag, size = 0x4, scoped, tag = 'scoped memory for tpu_custom_call.1']
    #allocation6 [shape = 'u8[512]{0}', space=smem, size = 0x200, scoped, tag = 'input window, operand 1, single buffered']
    #allocation7 [shape = 's32[1]{0}', space=sflag, size = 0x4, scoped, tag = 'scoped memory for tpu_custom_call.1']
    #allocation8 [shape = 'u8[16384]{0}', space=vmem, size = 0x4000, scoped, tag = 'input window, operand 3, single buffered']
    #allocation9 [shape = 'u8[4096]{0}', space=vmem, size = 0x1000, scoped, tag = 'output window, operand 0, single buffered']
    %10 = vsyncpa [#allocation5], 0
    %11 = vsyncpa [#allocation7], 0
    %12 = vsyncpa [#allocation3], 0
    %13 = vsyncpa [#allocation4], 0
    // Predicated region
    $region2: #{tpu_custom_call.1} parent=1 // pred_check
      _
    $region3: #{tpu_custom_call.1} parent=1 // pred_check_branch
      %15 = sbr.rel (0) target = $region5
    $region4: #{tpu_custom_call.1} parent=1 // pred_region
      %17 = vsyncadd [#allocation5], 0
      %s19 = sshll.u32 %s0, 4
      %s20 = int_to_ptr.vmem [resolvable:$true] %s19
      %22 = dma.vmem_to_smem %s20, 16, [#allocation2], [#allocation5]
    $region5: #{tpu_custom_call.1} parent=1 // pred_fallthru
      _
    // Predicated region
    $region6: #{tpu_custom_call.1} parent=1 // pred_check
      _
    $region7: #{tpu_custom_call.1} parent=1 // pred_check_branch
      %24 = sbr.rel (0) target = $region9
    $region8: #{tpu_custom_call.1} parent=1 // pred_region
      %26 = vsyncadd [#allocation7], 0
      %s28 = sshll.u32 %s1, 4
      %s29 = int_to_ptr.vmem [resolvable:$true] %s28
      %31 = dma.vmem_to_smem %s29, 16, [#allocation6], [#allocation7]
    $region9: #{tpu_custom_call.1} parent=1 // pred_fallthru
      _
    // Predicated region
    $region10: #{tpu_custom_call.1} parent=1 // pred_check
      _
    $region11: #{tpu_custom_call.1} parent=1 // pred_check_branch
      %33 = sbr.rel (0) target = $region13
    $region12: #{tpu_custom_call.1} parent=1 // pred_region
      _
    $region13: #{tpu_custom_call.1} parent=1 // pred_fallthru
      _
    // Predicated region
    $region14: #{tpu_custom_call.1} parent=1 // pred_check
      _
    $region15: #{tpu_custom_call.1} parent=1 // pred_check_branch
      %35 = sbr.rel (0) target = $region17
    $region16: #{tpu_custom_call.1} parent=1 // pred_region
      %37 = vsyncadd [#allocation3], 0
      %s38 = sshll.u32 %s3, 4
      %s39 = int_to_ptr.hbm [resolvable:$true] %s38
      %s40 = sshll.u32 [#allocation8], 4
      %s41 = int_to_ptr.vmem [resolvable:$true] %s40
      %46 = dma.hbm_to_vmem [thread:$0]  %s39, 512, %s41, [#allocation3], 64, 64, 4
    $region17: #{tpu_custom_call.1} parent=1 // pred_fallthru
      _
    // Predicated region
    $region18: #{tpu_custom_call.1} parent=1 // pred_check
      _
    $region19: #{tpu_custom_call.1} parent=1 // pred_check_branch
      %48 = sbr.rel (0) target = $region21
    $region20: #{tpu_custom_call.1} parent=1 // pred_region
      _
    $region21: #{tpu_custom_call.1} parent=1 // pred_fallthru
      _
    // Predicated region
    $region22: #{tpu_custom_call.1} parent=1 // pred_check
      _
    $region23: #{tpu_custom_call.1} parent=1 // pred_check_branch
      %50 = sbr.rel (0) target = $region25
    $region24: #{tpu_custom_call.1} parent=1 // pred_region
      %52 = dma.done [#allocation5], 16
    $region25: #{tpu_custom_call.1} parent=1 // pred_fallthru
      _
    // Predicated region
    $region26: #{tpu_custom_call.1} parent=1 // pred_check
      _
    $region27: #{tpu_custom_call.1} parent=1 // pred_check_branch
      %54 = sbr.rel (0) target = $region29
    $region28: #{tpu_custom_call.1} parent=1 // pred_region
      %56 = dma.done [#allocation7], 16
    $region29: #{tpu_custom_call.1} parent=1 // pred_fallthru
      _
    // Predicated region
    $region30: #{tpu_custom_call.1} parent=1 // pred_check
      _
    $region31: #{tpu_custom_call.1} parent=1 // pred_check_branch
      %58 = sbr.rel (0) target = $region33
    $region32: #{tpu_custom_call.1} parent=1 // pred_region
      %60 = dma.done [#allocation3], 512
    $region33: #{tpu_custom_call.1} parent=1 // pred_fallthru
      _
    %61 = sfence
    %v62 = vld [vmem:[%s2] sm:$0xff]
    %s63 = sld [smem:[#allocation2]]
    %v64 = vstv %s63
    %v65 = vmul.f32 %v64, %v62
    %s66 = sld [smem:[#allocation6]]
    %v67 = vstv %s66
    %v68 = vadd.f32 %v65, %v67
    %v69 = vand.u32 2147483647, %v68
    %vm70 = vcmp.le.f32.partialorder %v69, 0.7853982
    %vm71 = vcmp.lt.s32.totalorder %v68, 0
    %v72 = vand.u32 %v68, 2139095040
    %v73 = vshrl.u32 %v72, 23
    %v74 = vsub.s32 %v73, 127
    %v75 = vand.u32 2147483647, %v68
    %v76 = vand.u32 %v75, 8388607
    %v77 = vor.u32 %v76, 8388608
    %v78 = vsub.s32 0, %v77
    %v79 = vadd.s32 %v74, 1
    %vm80 = vcmp.gt.s32.totalorder %v79, 0
    %v81 = vsel %vm80, %v79, 0
    %v82 = vshrl.u32 %v81, 5
    %v83 = vand.u32 %v81, 31
    %v84 = vsub.s32 32, %v83
    %v85 = vshrl.u32 683565275, %v84
    %v86 = vshll.u32 683565275, %v83
    %v87 = vshrl.u32 2475754826, %v84
    %v88 = vor.u32 %v86, %v87
    %v89 = vshll.u32 2475754826, %v83
    %v90 = vshrl.u32 2131351028, %v84
    %v91 = vor.u32 %v89, %v90
    %v92 = vshll.u32 2131351028, %v83
    %v93 = vshrl.u32 2102212464, %v84
    %v94 = vor.u32 %v92, %v93
    %v95 = vshll.u32 2102212464, %v83
    %v96 = vshrl.u32 920167782, %v84
    %v97 = vor.u32 %v95, %v96
    %v98 = vshll.u32 920167782, %v83
    %v99 = vshrl.u32 1326507024, %v84
    %v100 = vor.u32 %v98, %v99
    %vm101 = vcmp.lt.s32.totalorder %v82, 1
    %vm102 = vcmp.lt.s32.totalorder %v82, 2
    %vm103 = vcmp.lt.s32.totalorder %v82, 3
    %vm104 = vcmp.lt.s32.totalorder %v82, 4
    %v105 = vsel %vm101, %v85, %v88
    %v106 = vsel %vm104, %v94, 2102212464
    %v107 = vsel %vm103, %v91, %v106
    %v108 = vsel %vm102, %v105, %v107
    %v109 = vsel %vm101, %v88, %v91
    %v110 = vsel %vm104, %v97, 920167782
    %v111 = vsel %vm103, %v94, %v110
    %v112 = vsel %vm102, %v109, %v111
    %v113 = vsel %vm101, %v91, %v94
    %v114 = vsel %vm104, %v100, 1326507024
    %v115 = vsel %vm103, %v97, %v114
    %v116 = vsel %vm102, %v113, %v115
    %v117 = vshll.u32 %v77, 8
    %v118 = vand.u32 %v117, 65535
    %v119 = vshrl.u32 %v117, 16
    %v120 = vand.u32 %v116, 65535
    %v121 = vshrl.u32 %v116, 16
    %v122 = vmul.u32 %v118, %v120
    %v123 = vmul.u32 %v118, %v121
    %v124 = vmul.u32 %v119, %v120
    %v125 = vmul.u32 %v119, %v121
    %v126 = vshll.u32 %v123, 16
    %v127 = vshrl.u32 %v123, 16
    %v128 = vshll.u32 %v124, 16
    %v129 = vshrl.u32 %v124, 16
    %vm130 = vc.u32 %v122, %v126
    %v131 = vsel %vm130, 1, 0
    %v132 = vadd.s32 %v122, %v126
    %v133 = vadd.s32 %v125, %v131
    %vm134 = vc.u32 %v132, %v128
    %v135 = vsel %vm134, 1, 0
    %v136 = vadd.s32 %v132, %v128
    %v137 = vadd.s32 %v133, %v135
    %v138 = vadd.s32 %v137, %v127
    %v139 = vadd.s32 %v138, %v129
    %v140 = vand.u32 %v117, 65535
    %v141 = vshrl.u32 %v117, 16
    %v142 = vand.u32 %v112, 65535
    %v143 = vshrl.u32 %v112, 16
    %v144 = vmul.u32 %v140, %v142
    %v145 = vmul.u32 %v140, %v143
    %v146 = vmul.u32 %v141, %v142
    %v147 = vmul.u32 %v141, %v143
    %v148 = vshll.u32 %v145, 16
    %v149 = vshrl.u32 %v145, 16
    %v150 = vshll.u32 %v146, 16
    %v151 = vshrl.u32 %v146, 16
    %vm152 = vc.u32 %v144, %v148
    %v153 = vsel %vm152, 1, 0
    %v154 = vadd.s32 %v144, %v148
    %v155 = vadd.s32 %v147, %v153
    %vm156 = vc.u32 %v154, %v150
    %v157 = vsel %vm156, 1, 0
    %v158 = vadd.s32 %v154, %v150
    %v159 = vadd.s32 %v155, %v157
    %v160 = vadd.s32 %v159, %v149
    %v161 = vadd.s32 %v160, %v151
    %v162 = vmul.u32 %v117, %v108
    %v163 = vadd.s32 %v139, %v158
    %vm164 = vc.u32 %v139, %v158
    %v165 = vadd.s32 %v161, 1
    %v166 = vsel %vm164, %v165, %v161
    %v167 = vadd.s32 %v162, %v166
    %v168 = vadd.s32 %v167, 536870912
    %v169 = vshrl.u32 %v168, 30
    %v170 = vshll.u32 %v169, 30
    %v171 = vsub.s32 %v167, %v170
    %vm172 = vcmp.lt.s32.totalorder %v171, 0
    %v173 = vsub.s32 0, %v171
    %v174 = vsel %vm172, %v173, %v171
    %v175 = vclz %v174
    %v176 = vsub.s32 %v175, 2
    %vm177 = vcmp.gt.s32.totalorder 0, %v176
    %v178 = vsel %vm177, 0, %v176
    %v179 = vsub.s32 32, %v178
    %v180 = vshll.u32 %v171, %v178
    %v181 = vshrl.u32 %v163, %v179
    %v182 = vor.u32 %v180, %v181
    %v183 = vsub.s32 4294967266, %v178
    %v184 = vadd.s32 %v183, 127
    %v185 = vshll.u32 %v184, 23
    %v186 = vor.u32 4788187, %v185
    %v187 = vand.u32 2147483647, %v186
    %v189 = vcvt.s32.f32 %v182
    %v190 = vmul.f32 %v189, %v187
    %v191 = vxor.u32 %v190, 2147483648
    %v192 = vsel %vm71, %v191, %v190
    %v193 = vsub.s32 4, %v169
    %v194 = vsel %vm71, %v193, %v169
    %v195 = vsel %vm70, %v68, %v192
    %v196 = vsel %vm70, 0, %v194
    %v197 = vmul.f32 %v195, %v195
    %v198 = vmul.f32 %v197, -0.001358992
    %v199 = vadd.f32 %v198, 0.041655596
    %v200 = vmul.f32 %v197, %v199
    %v201 = vadd.f32 %v200, -0.4999988
    %v202 = vmul.f32 %v197, %v201
    %v203 = vadd.f32 1.0, %v202
    %v204 = vmul.f32 %v195, %v195
    %v205 = vmul.f32 %v204, -0.00019511016
    %v206 = vadd.f32 %v205, 0.008332121
    %v207 = vmul.f32 %v204, %v206
    %v208 = vadd.f32 %v207, -0.16666654
    %v209 = vmul.f32 %v204, %v208
    %v210 = vadd.f32 %v209, 1.0
    %v211 = vmul.f32 %v210, %v195
    %vm212 = vweird.f32 %v68
    %v213 = vadd.s32 %v196, 3
    %v214 = vand.u32 %v213, 3
    %vm215 = vcmp.lt.s32.totalorder %v214, 2
    %vm216 = vcmp.eq.s32.totalorder %v214, 0
    %v217 = vxor.u32 %v211, 2147483648
    %v218 = vsel %vm216, %v203, %v217
    %vm219 = vcmp.eq.s32.totalorder %v214, 2
    %v220 = vxor.u32 %v203, 2147483648
    %v221 = vsel %vm219, %v220, %v211
    %v222 = vsel %vm215, %v218, %v221
    %v223 = vsel %vm212, nan, %v222
    %v224 = vld [vmem:[#allocation8] sm:$0xf]
    %s225 = sld [smem:[#allocation2 + $0x1]]
    %v226 = vstv %s225
    %v227 = vmul.f32 %v226, %v62
    %s228 = sld [smem:[#allocation6 + $0x1]]
    %v229 = vstv %s228
    %v230 = vadd.f32 %v227, %v229
    %v231 = vand.u32 2147483647, %v230
    %vm232 = vcmp.le.f32.partialorder %v231, 0.7853982
    %vm233 = vcmp.lt.s32.totalorder %v230, 0
    %v234 = vand.u32 %v230, 2139095040
    %v235 = vshrl.u32 %v234, 23
    %v236 = vsub.s32 %v235, 127
    %v237 = vand.u32 2147483647, %v230
    %v238 = vand.u32 %v237, 8388607
    %v239 = vor.u32 %v238, 8388608
    %v240 = vsub.s32 0, %v239
    %v241 = vadd.s32 %v236, 1
    %vm242 = vcmp.gt.s32.totalorder %v241, 0
    %v243 = vsel %vm242, %v241, 0
    %v244 = vshrl.u32 %v243, 5
    %v245 = vand.u32 %v243, 31
    %v246 = vsub.s32 32, %v245
    %v247 = vshrl.u32 683565275, %v246
    %v248 = vshll.u32 683565275, %v245
    %v249 = vshrl.u32 2475754826, %v246
    %v250 = vor.u32 %v248, %v249
    %v251 = vshll.u32 2475754826, %v245
    %v252 = vshrl.u32 2131351028, %v246
    %v253 = vor.u32 %v251, %v252
    %v254 = vshll.u32 2131351028, %v245
    %v255 = vshrl.u32 2102212464, %v246
    %v256 = vor.u32 %v254, %v255
    %v257 = vshll.u32 2102212464, %v245
    %v258 = vshrl.u32 920167782, %v246
    %v259 = vor.u32 %v257, %v258
    %v260 = vshll.u32 920167782, %v245
    %v261 = vshrl.u32 1326507024, %v246
    %v262 = vor.u32 %v260, %v261
    %vm263 = vcmp.lt.s32.totalorder %v244, 1
    %vm264 = vcmp.lt.s32.totalorder %v244, 2
    %vm265 = vcmp.lt.s32.totalorder %v244, 3
    %vm266 = vcmp.lt.s32.totalorder %v244, 4
    %v267 = vsel %vm263, %v247, %v250
    %v268 = vsel %vm266, %v256, 2102212464
    %v269 = vsel %vm265, %v253, %v268
    %v270 = vsel %vm264, %v267, %v269
    %v271 = vsel %vm263, %v250, %v253
    %v272 = vsel %vm266, %v259, 920167782
    %v273 = vsel %vm265, %v256, %v272
    %v274 = vsel %vm264, %v271, %v273
    %v275 = vsel %vm263, %v253, %v256
    %v276 = vsel %vm266, %v262, 1326507024
    %v277 = vsel %vm265, %v259, %v276
    %v278 = vsel %vm264, %v275, %v277
    %v279 = vshll.u32 %v239, 8
    %v280 = vand.u32 %v279, 65535
    %v281 = vshrl.u32 %v279, 16
    %v282 = vand.u32 %v278, 65535
    %v283 = vshrl.u32 %v278, 16
    %v284 = vmul.u32 %v280, %v282
    %v285 = vmul.u32 %v280, %v283
    %v286 = vmul.u32 %v281, %v282
    %v287 = vmul.u32 %v281, %v283
    %v288 = vshll.u32 %v285, 16
    %v289 = vshrl.u32 %v285, 16
    %v290 = vshll.u32 %v286, 16
    %v291 = vshrl.u32 %v286, 16
    %vm292 = vc.u32 %v284, %v288
    %v293 = vsel %vm292, 1, 0
    %v294 = vadd.s32 %v284, %v288
    %v295 = vadd.s32 %v287, %v293
    %vm296 = vc.u32 %v294, %v290
    %v297 = vsel %vm296, 1, 0
    %v298 = vadd.s32 %v294, %v290
    %v299 = vadd.s32 %v295, %v297
    %v300 = vadd.s32 %v299, %v289
    %v301 = vadd.s32 %v300, %v291
    %v302 = vand.u32 %v279, 65535
    %v303 = vshrl.u32 %v279, 16
    %v304 = vand.u32 %v274, 65535
    %v305 = vshrl.u32 %v274, 16
    %v306 = vmul.u32 %v302, %v304
    %v307 = vmul.u32 %v302, %v305
    %v308 = vmul.u32 %v303, %v304
    %v309 = vmul.u32 %v303, %v305
    %v310 = vshll.u32 %v307, 16
    %v311 = vshrl.u32 %v307, 16
    %v312 = vshll.u32 %v308, 16
    %v313 = vshrl.u32 %v308, 16
    %vm314 = vc.u32 %v306, %v310
    %v315 = vsel %vm314, 1, 0
    %v316 = vadd.s32 %v306, %v310
    %v317 = vadd.s32 %v309, %v315
    %vm318 = vc.u32 %v316, %v312
    %v319 = vsel %vm318, 1, 0
    %v320 = vadd.s32 %v316, %v312
    %v321 = vadd.s32 %v317, %v319
    %v322 = vadd.s32 %v321, %v311
    %v323 = vadd.s32 %v322, %v313
    %v324 = vmul.u32 %v279, %v270
    %v325 = vadd.s32 %v301, %v320
    %vm326 = vc.u32 %v301, %v320
    %v327 = vadd.s32 %v323, 1
    %v328 = vsel %vm326, %v327, %v323
    %v329 = vadd.s32 %v324, %v328
    %v330 = vadd.s32 %v329, 536870912
    %v331 = vshrl.u32 %v330, 30
    %v332 = vshll.u32 %v331, 30
    %v333 = vsub.s32 %v329, %v332
    %vm334 = vcmp.lt.s32.totalorder %v333, 0
    %v335 = vsub.s32 0, %v333
    %v336 = vsel %vm334, %v335, %v333
    %v337 = vclz %v336
    %v338 = vsub.s32 %v337, 2
    %vm339 = vcmp.gt.s32.totalorder 0, %v338
    %v340 = vsel %vm339, 0, %v338
    %v341 = vsub.s32 32, %v340
    %v342 = vshll.u32 %v333, %v340
    %v343 = vshrl.u32 %v325, %v341
    %v344 = vor.u32 %v342, %v343
    %v345 = vsub.s32 4294967266, %v340
    %v346 = vadd.s32 %v345, 127
    %v347 = vshll.u32 %v346, 23
    %v348 = vor.u32 4788187, %v347
    %v349 = vand.u32 2147483647, %v348
    %v351 = vcvt.s32.f32 %v344
    %v352 = vmul.f32 %v351, %v349
    %v353 = vxor.u32 %v352, 2147483648
    %v354 = vsel %vm233, %v353, %v352
    %v355 = vsub.s32 4, %v331
    %v356 = vsel %vm233, %v355, %v331
    %v357 = vsel %vm232, %v230, %v354
    %v358 = vsel %vm232, 0, %v356
    %v359 = vmul.f32 %v357, %v357
    %v360 = vmul.f32 %v359, -0.001358992
    %v361 = vadd.f32 %v360, 0.041655596
    %v362 = vmul.f32 %v359, %v361
    %v363 = vadd.f32 %v362, -0.4999988
    %v364 = vmul.f32 %v359, %v363
    %v365 = vadd.f32 1.0, %v364
    %v366 = vmul.f32 %v357, %v357
    %v367 = vmul.f32 %v366, -0.00019511016
    %v368 = vadd.f32 %v367, 0.008332121
    %v369 = vmul.f32 %v366, %v368
    %v370 = vadd.f32 %v369, -0.16666654
    %v371 = vmul.f32 %v366, %v370
    %v372 = vadd.f32 %v371, 1.0
    %v373 = vmul.f32 %v372, %v357
    %vm374 = vweird.f32 %v230
    %v375 = vadd.s32 %v358, 3
    %v376 = vand.u32 %v375, 3
    %vm377 = vcmp.lt.s32.totalorder %v376, 2
    %vm378 = vcmp.eq.s32.totalorder %v376, 0
    %v379 = vxor.u32 %v373, 2147483648
    %v380 = vsel %vm378, %v365, %v379
    %vm381 = vcmp.eq.s32.totalorder %v376, 2
    %v382 = vxor.u32 %v365, 2147483648
    %v383 = vsel %vm381, %v382, %v373
    %v384 = vsel %vm377, %v380, %v383
    %v385 = vsel %vm374, nan, %v384
    %s386 = scalar_lea.vmem [#allocation8], 4
    %v387 = vld [vmem:[%s386] sm:$0xf]
    %vm388 = vcmask 31744
    %v390 = vsel %vm388, %v385, 0
    %vm392 = vcmask 1043456
    %v394 = vsel %vm392, %v387, 0
    %396 = vmatpush.msra.mxu0 0.0
    %397 = vmatpush.msra.mxu0 0.0
    %398 = vmatpush.msra.mxu0 0.0
    %399 = vmatpush.msra.mxu0 0.0
    %400 = vmatpush.msra.mxu0 0.0
    %401 = vmatpush.msra.mxu0 0.0
    %402 = vmatpush.msra.mxu0 0.0
    %403 = vmatpush.msra.mxu0 0.0
    %404 = vmatpush.msra.mxu0 0.0
    %405 = vmatpush.msra.mxu0 0.0
    %406 = vmatpush.msra.mxu0 0.0
    %407 = vmatpush.msra.mxu0 0.0
    %408 = vmatpush.msra.mxu0 0.0
    %409 = vmatpush.msra.mxu0 0.0
    %410 = vmatpush.msra.mxu0 0.0
    %411 = vmatpush.msra.mxu0 %v394
    %412 = vmatmul.f32.gmra.mxu0 %v390
    %v413 = vpop.f32.mrf.mxu0
    %v414 = vadd.f32 0.0, %v413
    %415 = vdwg.mxu0
    %v417 = vsel %vm388, %v223, 0
    %v420 = vsel %vm392, %v224, 0
    %422 = vmatpush.msra.mxu0 0.0
    %423 = vmatpush.msra.mxu0 0.0
    %424 = vmatpush.msra.mxu0 0.0
    %425 = vmatpush.msra.mxu0 0.0
    %426 = vmatpush.msra.mxu0 0.0
    %427 = vmatpush.msra.mxu0 0.0
    %428 = vmatpush.msra.mxu0 0.0
    %429 = vmatpush.msra.mxu0 0.0
    %430 = vmatpush.msra.mxu0 0.0
    %431 = vmatpush.msra.mxu0 0.0
    %432 = vmatpush.msra.mxu0 0.0
    %433 = vmatpush.msra.mxu0 0.0
    %434 = vmatpush.msra.mxu0 0.0
    %435 = vmatpush.msra.mxu0 0.0
    %436 = vmatpush.msra.mxu0 0.0
    %437 = vmatpush.msra.mxu0 %v420
    %438 = vmatmul.f32.gmra.mxu0 %v417
    %v439 = vpop.f32.mrf.mxu0
    %v440 = vadd.f32 %v414, %v439
    %441 = vdwg.mxu0
    %s442 = sld [smem:[#allocation2 + $0x2]]
    %v443 = vstv %s442
    %v444 = vmul.f32 %v443, %v62
    %s445 = sld [smem:[#allocation6 + $0x2]]
    %v446 = vstv %s445
    %v447 = vadd.f32 %v444, %v446
    %v448 = vand.u32 2147483647, %v447
    %vm449 = vcmp.le.f32.partialorder %v448, 0.7853982
    %vm450 = vcmp.lt.s32.totalorder %v447, 0
    %v451 = vand.u32 %v447, 2139095040
    %v452 = vshrl.u32 %v451, 23
    %v453 = vsub.s32 %v452, 127
    %v454 = vand.u32 2147483647, %v447
    %v455 = vand.u32 %v454, 8388607
    %v456 = vor.u32 %v455, 8388608
    %v457 = vsub.s32 0, %v456
    %v458 = vadd.s32 %v453, 1
    %vm459 = vcmp.gt.s32.totalorder %v458, 0
    %v460 = vsel %vm459, %v458, 0
    %v461 = vshrl.u32 %v460, 5
    %v462 = vand.u32 %v460, 31
    %v463 = vsub.s32 32, %v462
    %v464 = vshrl.u32 683565275, %v463
    %v465 = vshll.u32 683565275, %v462
    %v466 = vshrl.u32 2475754826, %v463
    %v467 = vor.u32 %v465, %v466
    %v468 = vshll.u32 2475754826, %v462
    %v469 = vshrl.u32 2131351028, %v463
    %v470 = vor.u32 %v468, %v469
    %v471 = vshll.u32 2131351028, %v462
    %v472 = vshrl.u32 2102212464, %v463
    %v473 = vor.u32 %v471, %v472
    %v474 = vshll.u32 2102212464, %v462
    %v475 = vshrl.u32 920167782, %v463
    %v476 = vor.u32 %v474, %v475
    %v477 = vshll.u32 920167782, %v462
    %v478 = vshrl.u32 1326507024, %v463
    %v479 = vor.u32 %v477, %v478
    %vm480 = vcmp.lt.s32.totalorder %v461, 1
    %vm481 = vcmp.lt.s32.totalorder %v461, 2
    %vm482 = vcmp.lt.s32.totalorder %v461, 3
    %vm483 = vcmp.lt.s32.totalorder %v461, 4
    %v484 = vsel %vm480, %v464, %v467
    %v485 = vsel %vm483, %v473, 2102212464
    %v486 = vsel %vm482, %v470, %v485
    %v487 = vsel %vm481, %v484, %v486
    %v488 = vsel %vm480, %v467, %v470
    %v489 = vsel %vm483, %v476, 920167782
    %v490 = vsel %vm482, %v473, %v489
    %v491 = vsel %vm481, %v488, %v490
    %v492 = vsel %vm480, %v470, %v473
    %v493 = vsel %vm483, %v479, 1326507024
    %v494 = vsel %vm482, %v476, %v493
    %v495 = vsel %vm481, %v492, %v494
    %v496 = vshll.u32 %v456, 8
    %v497 = vand.u32 %v496, 65535
    %v498 = vshrl.u32 %v496, 16
    %v499 = vand.u32 %v495, 65535
    %v500 = vshrl.u32 %v495, 16
    %v501 = vmul.u32 %v497, %v499
    %v502 = vmul.u32 %v497, %v500
    %v503 = vmul.u32 %v498, %v499
    %v504 = vmul.u32 %v498, %v500
    %v505 = vshll.u32 %v502, 16
    %v506 = vshrl.u32 %v502, 16
    %v507 = vshll.u32 %v503, 16
    %v508 = vshrl.u32 %v503, 16
    %vm509 = vc.u32 %v501, %v505
    %v510 = vsel %vm509, 1, 0
    %v511 = vadd.s32 %v501, %v505
    %v512 = vadd.s32 %v504, %v510
    %vm513 = vc.u32 %v511, %v507
    %v514 = vsel %vm513, 1, 0
    %v515 = vadd.s32 %v511, %v507
    %v516 = vadd.s32 %v512, %v514
    %v517 = vadd.s32 %v516, %v506
    %v518 = vadd.s32 %v517, %v508
    %v519 = vand.u32 %v496, 65535
    %v520 = vshrl.u32 %v496, 16
    %v521 = vand.u32 %v491, 65535
    %v522 = vshrl.u32 %v491, 16
    %v523 = vmul.u32 %v519, %v521
    %v524 = vmul.u32 %v519, %v522
    %v525 = vmul.u32 %v520, %v521
    %v526 = vmul.u32 %v520, %v522
    %v527 = vshll.u32 %v524, 16
    %v528 = vshrl.u32 %v524, 16
    %v529 = vshll.u32 %v525, 16
    %v530 = vshrl.u32 %v525, 16
    %vm531 = vc.u32 %v523, %v527
    %v532 = vsel %vm531, 1, 0
    %v533 = vadd.s32 %v523, %v527
    %v534 = vadd.s32 %v526, %v532
    %vm535 = vc.u32 %v533, %v529
    %v536 = vsel %vm535, 1, 0
    %v537 = vadd.s32 %v533, %v529
    %v538 = vadd.s32 %v534, %v536
    %v539 = vadd.s32 %v538, %v528
    %v540 = vadd.s32 %v539, %v530
    %v541 = vmul.u32 %v496, %v487
    %v542 = vadd.s32 %v518, %v537
    %vm543 = vc.u32 %v518, %v537
    %v544 = vadd.s32 %v540, 1
    %v545 = vsel %vm543, %v544, %v540
    %v546 = vadd.s32 %v541, %v545
    %v547 = vadd.s32 %v546, 536870912
    %v548 = vshrl.u32 %v547, 30
    %v549 = vshll.u32 %v548, 30
    %v550 = vsub.s32 %v546, %v549
    %vm551 = vcmp.lt.s32.totalorder %v550, 0
    %v552 = vsub.s32 0, %v550
    %v553 = vsel %vm551, %v552, %v550
    %v554 = vclz %v553
    %v555 = vsub.s32 %v554, 2
    %vm556 = vcmp.gt.s32.totalorder 0, %v555
    %v557 = vsel %vm556, 0, %v555
    %v558 = vsub.s32 32, %v557
    %v559 = vshll.u32 %v550, %v557
    %v560 = vshrl.u32 %v542, %v558
    %v561 = vor.u32 %v559, %v560
    %v562 = vsub.s32 4294967266, %v557
    %v563 = vadd.s32 %v562, 127
    %v564 = vshll.u32 %v563, 23
    %v565 = vor.u32 4788187, %v564
    %v566 = vand.u32 2147483647, %v565
    %v568 = vcvt.s32.f32 %v561
    %v569 = vmul.f32 %v568, %v566
    %v570 = vxor.u32 %v569, 2147483648
    %v571 = vsel %vm450, %v570, %v569
    %v572 = vsub.s32 4, %v548
    %v573 = vsel %vm450, %v572, %v548
    %v574 = vsel %vm449, %v447, %v571
    %v575 = vsel %vm449, 0, %v573
    %v576 = vmul.f32 %v574, %v574
    %v577 = vmul.f32 %v576, -0.001358992
    %v578 = vadd.f32 %v577, 0.041655596
    %v579 = vmul.f32 %v576, %v578
    %v580 = vadd.f32 %v579, -0.4999988
    %v581 = vmul.f32 %v576, %v580
    %v582 = vadd.f32 1.0, %v581
    %v583 = vmul.f32 %v574, %v574
    %v584 = vmul.f32 %v583, -0.00019511016
    %v585 = vadd.f32 %v584, 0.008332121
    %v586 = vmul.f32 %v583, %v585
    %v587 = vadd.f32 %v586, -0.16666654
    %v588 = vmul.f32 %v583, %v587
    %v589 = vadd.f32 %v588, 1.0
    %v590 = vmul.f32 %v589, %v574
    %vm591 = vweird.f32 %v447
    %v592 = vadd.s32 %v575, 3
    %v593 = vand.u32 %v592, 3
    %vm594 = vcmp.lt.s32.totalorder %v593, 2
    %vm595 = vcmp.eq.s32.totalorder %v593, 0
    %v596 = vxor.u32 %v590, 2147483648
    %v597 = vsel %vm595, %v582, %v596
    %vm598 = vcmp.eq.s32.totalorder %v593, 2
    %v599 = vxor.u32 %v582, 2147483648
    %v600 = vsel %vm598, %v599, %v590
    %v601 = vsel %vm594, %v597, %v600
    %v602 = vsel %vm591, nan, %v601
    %s603 = scalar_lea.vmem [#allocation8], 8
    %v604 = vld [vmem:[%s603] sm:$0xf]
    %v606 = vsel %vm388, %v602, 0
    %v609 = vsel %vm392, %v604, 0
    %611 = vmatpush.msra.mxu0 0.0
    %612 = vmatpush.msra.mxu0 0.0
    %613 = vmatpush.msra.mxu0 0.0
    %614 = vmatpush.msra.mxu0 0.0
    %615 = vmatpush.msra.mxu0 0.0
    %616 = vmatpush.msra.mxu0 0.0
    %617 = vmatpush.msra.mxu0 0.0
    %618 = vmatpush.msra.mxu0 0.0
    %619 = vmatpush.msra.mxu0 0.0
    %620 = vmatpush.msra.mxu0 0.0
    %621 = vmatpush.msra.mxu0 0.0
    %622 = vmatpush.msra.mxu0 0.0
    %623 = vmatpush.msra.mxu0 0.0
    %624 = vmatpush.msra.mxu0 0.0
    %625 = vmatpush.msra.mxu0 0.0
    %626 = vmatpush.msra.mxu0 %v609
    %627 = vmatmul.f32.gmra.mxu0 %v606
    %v628 = vpop.f32.mrf.mxu0
    %v629 = vadd.f32 0.0, %v628
    %630 = vdwg.mxu0
    %v631 = vadd.f32 %v440, %v629
    %s632 = sld [smem:[#allocation2 + $0x3]]
    %v633 = vstv %s632
    %v634 = vmul.f32 %v633, %v62
    %s635 = sld [smem:[#allocation6 + $0x3]]
    %v636 = vstv %s635
    %v637 = vadd.f32 %v634, %v636
    %v638 = vand.u32 2147483647, %v637
    %vm639 = vcmp.le.f32.partialorder %v638, 0.7853982
    %vm640 = vcmp.lt.s32.totalorder %v637, 0
    %v641 = vand.u32 %v637, 2139095040
    %v642 = vshrl.u32 %v641, 23
    %v643 = vsub.s32 %v642, 127
    %v644 = vand.u32 2147483647, %v637
    %v645 = vand.u32 %v644, 8388607
    %v646 = vor.u32 %v645, 8388608
    %v647 = vsub.s32 0, %v646
    %v648 = vadd.s32 %v643, 1
    %vm649 = vcmp.gt.s32.totalorder %v648, 0
    %v650 = vsel %vm649, %v648, 0
    %v651 = vshrl.u32 %v650, 5
    %v652 = vand.u32 %v650, 31
    %v653 = vsub.s32 32, %v652
    %v654 = vshrl.u32 683565275, %v653
    %v655 = vshll.u32 683565275, %v652
    %v656 = vshrl.u32 2475754826, %v653
    %v657 = vor.u32 %v655, %v656
    %v658 = vshll.u32 2475754826, %v652
    %v659 = vshrl.u32 2131351028, %v653
    %v660 = vor.u32 %v658, %v659
    %v661 = vshll.u32 2131351028, %v652
    %v662 = vshrl.u32 2102212464, %v653
    %v663 = vor.u32 %v661, %v662
    %v664 = vshll.u32 2102212464, %v652
    %v665 = vshrl.u32 920167782, %v653
    %v666 = vor.u32 %v664, %v665
    %v667 = vshll.u32 920167782, %v652
    %v668 = vshrl.u32 1326507024, %v653
    %v669 = vor.u32 %v667, %v668
    %vm670 = vcmp.lt.s32.totalorder %v651, 1
    %vm671 = vcmp.lt.s32.totalorder %v651, 2
    %vm672 = vcmp.lt.s32.totalorder %v651, 3
    %vm673 = vcmp.lt.s32.totalorder %v651, 4
    %v674 = vsel %vm670, %v654, %v657
    %v675 = vsel %vm673, %v663, 2102212464
    %v676 = vsel %vm672, %v660, %v675
    %v677 = vsel %vm671, %v674, %v676
    %v678 = vsel %vm670, %v657, %v660
    %v679 = vsel %vm673, %v666, 920167782
    %v680 = vsel %vm672, %v663, %v679
    %v681 = vsel %vm671, %v678, %v680
    %v682 = vsel %vm670, %v660, %v663
    %v683 = vsel %vm673, %v669, 1326507024
    %v684 = vsel %vm672, %v666, %v683
    %v685 = vsel %vm671, %v682, %v684
    %v686 = vshll.u32 %v646, 8
    %v687 = vand.u32 %v686, 65535
    %v688 = vshrl.u32 %v686, 16
    %v689 = vand.u32 %v685, 65535
    %v690 = vshrl.u32 %v685, 16
    %v691 = vmul.u32 %v687, %v689
    %v692 = vmul.u32 %v687, %v690
    %v693 = vmul.u32 %v688, %v689
    %v694 = vmul.u32 %v688, %v690
    %v695 = vshll.u32 %v692, 16
    %v696 = vshrl.u32 %v692, 16
    %v697 = vshll.u32 %v693, 16
    %v698 = vshrl.u32 %v693, 16
    %vm699 = vc.u32 %v691, %v695
    %v700 = vsel %vm699, 1, 0
    %v701 = vadd.s32 %v691, %v695
    %v702 = vadd.s32 %v694, %v700
    %vm703 = vc.u32 %v701, %v697
    %v704 = vsel %vm703, 1, 0
    %v705 = vadd.s32 %v701, %v697
    %v706 = vadd.s32 %v702, %v704
    %v707 = vadd.s32 %v706, %v696
    %v708 = vadd.s32 %v707, %v698
    %v709 = vand.u32 %v686, 65535
    %v710 = vshrl.u32 %v686, 16
    %v711 = vand.u32 %v681, 65535
    %v712 = vshrl.u32 %v681, 16
    %v713 = vmul.u32 %v709, %v711
    %v714 = vmul.u32 %v709, %v712
    %v715 = vmul.u32 %v710, %v711
    %v716 = vmul.u32 %v710, %v712
    %v717 = vshll.u32 %v714, 16
    %v718 = vshrl.u32 %v714, 16
    %v719 = vshll.u32 %v715, 16
    %v720 = vshrl.u32 %v715, 16
    %vm721 = vc.u32 %v713, %v717
    %v722 = vsel %vm721, 1, 0
    %v723 = vadd.s32 %v713, %v717
    %v724 = vadd.s32 %v716, %v722
    %vm725 = vc.u32 %v723, %v719
    %v726 = vsel %vm725, 1, 0
    %v727 = vadd.s32 %v723, %v719
    %v728 = vadd.s32 %v724, %v726
    %v729 = vadd.s32 %v728, %v718
    %v730 = vadd.s32 %v729, %v720
    %v731 = vmul.u32 %v686, %v677
    %v732 = vadd.s32 %v708, %v727
    %vm733 = vc.u32 %v708, %v727
    %v734 = vadd.s32 %v730, 1
    %v735 = vsel %vm733, %v734, %v730
    %v736 = vadd.s32 %v731, %v735
    %v737 = vadd.s32 %v736, 536870912
    %v738 = vshrl.u32 %v737, 30
    %v739 = vshll.u32 %v738, 30
    %v740 = vsub.s32 %v736, %v739
    %vm741 = vcmp.lt.s32.totalorder %v740, 0
    %v742 = vsub.s32 0, %v740
    %v743 = vsel %vm741, %v742, %v740
    %v744 = vclz %v743
    %v745 = vsub.s32 %v744, 2
    %vm746 = vcmp.gt.s32.totalorder 0, %v745
    %v747 = vsel %vm746, 0, %v745
    %v748 = vsub.s32 32, %v747
    %v749 = vshll.u32 %v740, %v747
    %v750 = vshrl.u32 %v732, %v748
    %v751 = vor.u32 %v749, %v750
    %v752 = vsub.s32 4294967266, %v747
    %v753 = vadd.s32 %v752, 127
    %v754 = vshll.u32 %v753, 23
    %v755 = vor.u32 4788187, %v754
    %v756 = vand.u32 2147483647, %v755
    %v758 = vcvt.s32.f32 %v751
    %v759 = vmul.f32 %v758, %v756
    %v760 = vxor.u32 %v759, 2147483648
    %v761 = vsel %vm640, %v760, %v759
    %v762 = vsub.s32 4, %v738
    %v763 = vsel %vm640, %v762, %v738
    %v764 = vsel %vm639, %v637, %v761
    %v765 = vsel %vm639, 0, %v763
    %v766 = vmul.f32 %v764, %v764
    %v767 = vmul.f32 %v766, -0.001358992
    %v768 = vadd.f32 %v767, 0.041655596
    %v769 = vmul.f32 %v766, %v768
    %v770 = vadd.f32 %v769, -0.4999988
    %v771 = vmul.f32 %v766, %v770
    %v772 = vadd.f32 1.0, %v771
    %v773 = vmul.f32 %v764, %v764
    %v774 = vmul.f32 %v773, -0.00019511016
    %v775 = vadd.f32 %v774, 0.008332121
    %v776 = vmul.f32 %v773, %v775
    %v777 = vadd.f32 %v776, -0.16666654
    %v778 = vmul.f32 %v773, %v777
    %v779 = vadd.f32 %v778, 1.0
    %v780 = vmul.f32 %v779, %v764
    %vm781 = vweird.f32 %v637
    %v782 = vadd.s32 %v765, 3
    %v783 = vand.u32 %v782, 3
    %vm784 = vcmp.lt.s32.totalorder %v783, 2
    %vm785 = vcmp.eq.s32.totalorder %v783, 0
    %v786 = vxor.u32 %v780, 2147483648
    %v787 = vsel %vm785, %v772, %v786
    %vm788 = vcmp.eq.s32.totalorder %v783, 2
    %v789 = vxor.u32 %v772, 2147483648
    %v790 = vsel %vm788, %v789, %v780
    %v791 = vsel %vm784, %v787, %v790
    %v792 = vsel %vm781, nan, %v791
    %s793 = scalar_lea.vmem [#allocation8], 12
    %v794 = vld [vmem:[%s793] sm:$0xf]
    %v796 = vsel %vm388, %v792, 0
    %v799 = vsel %vm392, %v794, 0
    %801 = vmatpush.msra.mxu0 0.0
    %802 = vmatpush.msra.mxu0 0.0
    %803 = vmatpush.msra.mxu0 0.0
    %804 = vmatpush.msra.mxu0 0.0
    %805 = vmatpush.msra.mxu0 0.0
    %806 = vmatpush.msra.mxu0 0.0
    %807 = vmatpush.msra.mxu0 0.0
    %808 = vmatpush.msra.mxu0 0.0
    %809 = vmatpush.msra.mxu0 0.0
    %810 = vmatpush.msra.mxu0 0.0
    %811 = vmatpush.msra.mxu0 0.0
    %812 = vmatpush.msra.mxu0 0.0
    %813 = vmatpush.msra.mxu0 0.0
    %814 = vmatpush.msra.mxu0 0.0
    %815 = vmatpush.msra.mxu0 0.0
    %816 = vmatpush.msra.mxu0 %v799
    %817 = vmatmul.f32.gmra.mxu0 %v796
    %v818 = vpop.f32.mrf.mxu0
    %v819 = vadd.f32 0.0, %v818
    %820 = vdwg.mxu0
    %v821 = vadd.f32 %v631, %v819
    %s822 = sld [smem:[#allocation2 + $0x4]]
    %v823 = vstv %s822
    %v824 = vmul.f32 %v823, %v62
    %s825 = sld [smem:[#allocation6 + $0x4]]
    %v826 = vstv %s825
    %v827 = vadd.f32 %v824, %v826
    %v828 = vand.u32 2147483647, %v827
    %vm829 = vcmp.le.f32.partialorder %v828, 0.7853982
    %vm830 = vcmp.lt.s32.totalorder %v827, 0
    %v831 = vand.u32 %v827, 2139095040
    %v832 = vshrl.u32 %v831, 23
    %v833 = vsub.s32 %v832, 127
    %v834 = vand.u32 2147483647, %v827
    %v835 = vand.u32 %v834, 8388607
    %v836 = vor.u32 %v835, 8388608
    %v837 = vsub.s32 0, %v836
    %v838 = vadd.s32 %v833, 1
    %vm839 = vcmp.gt.s32.totalorder %v838, 0
    %v840 = vsel %vm839, %v838, 0
    %v841 = vshrl.u32 %v840, 5
    %v842 = vand.u32 %v840, 31
    %v843 = vsub.s32 32, %v842
    %v844 = vshrl.u32 683565275, %v843
    %v845 = vshll.u32 683565275, %v842
    %v846 = vshrl.u32 2475754826, %v843
    %v847 = vor.u32 %v845, %v846
    %v848 = vshll.u32 2475754826, %v842
    %v849 = vshrl.u32 2131351028, %v843
    %v850 = vor.u32 %v848, %v849
    %v851 = vshll.u32 2131351028, %v842
    %v852 = vshrl.u32 2102212464, %v843
    %v853 = vor.u32 %v851, %v852
    %v854 = vshll.u32 2102212464, %v842
    %v855 = vshrl.u32 920167782, %v843
    %v856 = vor.u32 %v854, %v855
    %v857 = vshll.u32 920167782, %v842
    %v858 = vshrl.u32 1326507024, %v843
    %v859 = vor.u32 %v857, %v858
    %vm860 = vcmp.lt.s32.totalorder %v841, 1
    %vm861 = vcmp.lt.s32.totalorder %v841, 2
    %vm862 = vcmp.lt.s32.totalorder %v841, 3
    %vm863 = vcmp.lt.s32.totalorder %v841, 4
    %v864 = vsel %vm860, %v844, %v847
    %v865 = vsel %vm863, %v853, 2102212464
    %v866 = vsel %vm862, %v850, %v865
    %v867 = vsel %vm861, %v864, %v866
    %v868 = vsel %vm860, %v847, %v850
    %v869 = vsel %vm863, %v856, 920167782
    %v870 = vsel %vm862, %v853, %v869
    %v871 = vsel %vm861, %v868, %v870
    %v872 = vsel %vm860, %v850, %v853
    %v873 = vsel %vm863, %v859, 1326507024
    %v874 = vsel %vm862, %v856, %v873
    %v875 = vsel %vm861, %v872, %v874
    %v876 = vshll.u32 %v836, 8
    %v877 = vand.u32 %v876, 65535
    %v878 = vshrl.u32 %v876, 16
    %v879 = vand.u32 %v875, 65535
    %v880 = vshrl.u32 %v875, 16
    %v881 = vmul.u32 %v877, %v879
    %v882 = vmul.u32 %v877, %v880
    %v883 = vmul.u32 %v878, %v879
    %v884 = vmul.u32 %v878, %v880
    %v885 = vshll.u32 %v882, 16
    %v886 = vshrl.u32 %v882, 16
    %v887 = vshll.u32 %v883, 16
    %v888 = vshrl.u32 %v883, 16
    %vm889 = vc.u32 %v881, %v885
    %v890 = vsel %vm889, 1, 0
    %v891 = vadd.s32 %v881, %v885
    %v892 = vadd.s32 %v884, %v890
    %vm893 = vc.u32 %v891, %v887
    %v894 = vsel %vm893, 1, 0
    %v895 = vadd.s32 %v891, %v887
    %v896 = vadd.s32 %v892, %v894
    %v897 = vadd.s32 %v896, %v886
    %v898 = vadd.s32 %v897, %v888
    %v899 = vand.u32 %v876, 65535
    %v900 = vshrl.u32 %v876, 16
    %v901 = vand.u32 %v871, 65535
    %v902 = vshrl.u32 %v871, 16
    %v903 = vmul.u32 %v899, %v901
    %v904 = vmul.u32 %v899, %v902
    %v905 = vmul.u32 %v900, %v901
    %v906 = vmul.u32 %v900, %v902
    %v907 = vshll.u32 %v904, 16
    %v908 = vshrl.u32 %v904, 16
    %v909 = vshll.u32 %v905, 16
    %v910 = vshrl.u32 %v905, 16
    %vm911 = vc.u32 %v903, %v907
    %v912 = vsel %vm911, 1, 0
    %v913 = vadd.s32 %v903, %v907
    %v914 = vadd.s32 %v906, %v912
    %vm915 = vc.u32 %v913, %v909
    %v916 = vsel %vm915, 1, 0
    %v917 = vadd.s32 %v913, %v909
    %v918 = vadd.s32 %v914, %v916
    %v919 = vadd.s32 %v918, %v908
    %v920 = vadd.s32 %v919, %v910
    %v921 = vmul.u32 %v876, %v867
    %v922 = vadd.s32 %v898, %v917
    %vm923 = vc.u32 %v898, %v917
    %v924 = vadd.s32 %v920, 1
    %v925 = vsel %vm923, %v924, %v920
    %v926 = vadd.s32 %v921, %v925
    %v927 = vadd.s32 %v926, 536870912
    %v928 = vshrl.u32 %v927, 30
    %v929 = vshll.u32 %v928, 30
    %v930 = vsub.s32 %v926, %v929
    %vm931 = vcmp.lt.s32.totalorder %v930, 0
    %v932 = vsub.s32 0, %v930
    %v933 = vsel %vm931, %v932, %v930
    %v934 = vclz %v933
    %v935 = vsub.s32 %v934, 2
    %vm936 = vcmp.gt.s32.totalorder 0, %v935
    %v937 = vsel %vm936, 0, %v935
    %v938 = vsub.s32 32, %v937
    %v939 = vshll.u32 %v930, %v937
    %v940 = vshrl.u32 %v922, %v938
    %v941 = vor.u32 %v939, %v940
    %v942 = vsub.s32 4294967266, %v937
    %v943 = vadd.s32 %v942, 127
    %v944 = vshll.u32 %v943, 23
    %v945 = vor.u32 4788187, %v944
    %v946 = vand.u32 2147483647, %v945
    %v948 = vcvt.s32.f32 %v941
    %v949 = vmul.f32 %v948, %v946
    %v950 = vxor.u32 %v949, 2147483648
    %v951 = vsel %vm830, %v950, %v949
    %v952 = vsub.s32 4, %v928
    %v953 = vsel %vm830, %v952, %v928
    %v954 = vsel %vm829, %v827, %v951
    %v955 = vsel %vm829, 0, %v953
    %v956 = vmul.f32 %v954, %v954
    %v957 = vmul.f32 %v956, -0.001358992
    %v958 = vadd.f32 %v957, 0.041655596
    %v959 = vmul.f32 %v956, %v958
    %v960 = vadd.f32 %v959, -0.4999988
    %v961 = vmul.f32 %v956, %v960
    %v962 = vadd.f32 1.0, %v961
    %v963 = vmul.f32 %v954, %v954
    %v964 = vmul.f32 %v963, -0.00019511016
    %v965 = vadd.f32 %v964, 0.008332121
    %v966 = vmul.f32 %v963, %v965
    %v967 = vadd.f32 %v966, -0.16666654
    %v968 = vmul.f32 %v963, %v967
    %v969 = vadd.f32 %v968, 1.0
    %v970 = vmul.f32 %v969, %v954
    %vm971 = vweird.f32 %v827
    %v972 = vadd.s32 %v955, 3
    %v973 = vand.u32 %v972, 3
    %vm974 = vcmp.lt.s32.totalorder %v973, 2
    %vm975 = vcmp.eq.s32.totalorder %v973, 0
    %v976 = vxor.u32 %v970, 2147483648
    %v977 = vsel %vm975, %v962, %v976
    %vm978 = vcmp.eq.s32.totalorder %v973, 2
    %v979 = vxor.u32 %v962, 2147483648
    %v980 = vsel %vm978, %v979, %v970
    %v981 = vsel %vm974, %v977, %v980
    %v982 = vsel %vm971, nan, %v981
    %s983 = scalar_lea.vmem [#allocation8], 16
    %v984 = vld [vmem:[%s983] sm:$0xf]
    %v986 = vsel %vm388, %v982, 0
    %v989 = vsel %vm392, %v984, 0
    %991 = vmatpush.msra.mxu0 0.0
    %992 = vmatpush.msra.mxu0 0.0
    %993 = vmatpush.msra.mxu0 0.0
    %994 = vmatpush.msra.mxu0 0.0
    %995 = vmatpush.msra.mxu0 0.0
    %996 = vmatpush.msra.mxu0 0.0
    %997 = vmatpush.msra.mxu0 0.0
    %998 = vmatpush.msra.mxu0 0.0
    %999 = vmatpush.msra.mxu0 0.0
    %1000 = vmatpush.msra.mxu0 0.0
    %1001 = vmatpush.msra.mxu0 0.0
    %1002 = vmatpush.msra.mxu0 0.0
    %1003 = vmatpush.msra.mxu0 0.0
    %1004 = vmatpush.msra.mxu0 0.0
    %1005 = vmatpush.msra.mxu0 0.0
    %1006 = vmatpush.msra.mxu0 %v989
    %1007 = vmatmul.f32.gmra.mxu0 %v986
    %v1008 = vpop.f32.mrf.mxu0
    %v1009 = vadd.f32 0.0, %v1008
    %1010 = vdwg.mxu0
    %v1011 = vadd.f32 %v821, %v1009
    %s1012 = sld [smem:[#allocation2 + $0x5]]
    %v1013 = vstv %s1012
    %v1014 = vmul.f32 %v1013, %v62
    %s1015 = sld [smem:[#allocation6 + $0x5]]
    %v1016 = vstv %s1015
    %v1017 = vadd.f32 %v1014, %v1016
    %v1018 = vand.u32 2147483647, %v1017
    %vm1019 = vcmp.le.f32.partialorder %v1018, 0.7853982
    %vm1020 = vcmp.lt.s32.totalorder %v1017, 0
    %v1021 = vand.u32 %v1017, 2139095040
    %v1022 = vshrl.u32 %v1021, 23
    %v1023 = vsub.s32 %v1022, 127
    %v1024 = vand.u32 2147483647, %v1017
    %v1025 = vand.u32 %v1024, 8388607
    %v1026 = vor.u32 %v1025, 8388608
    %v1027 = vsub.s32 0, %v1026
    %v1028 = vadd.s32 %v1023, 1
    %vm1029 = vcmp.gt.s32.totalorder %v1028, 0
    %v1030 = vsel %vm1029, %v1028, 0
    %v1031 = vshrl.u32 %v1030, 5
    %v1032 = vand.u32 %v1030, 31
    %v1033 = vsub.s32 32, %v1032
    %v1034 = vshrl.u32 683565275, %v1033
    %v1035 = vshll.u32 683565275, %v1032
    %v1036 = vshrl.u32 2475754826, %v1033
    %v1037 = vor.u32 %v1035, %v1036
    %v1038 = vshll.u32 2475754826, %v1032
    %v1039 = vshrl.u32 2131351028, %v1033
    %v1040 = vor.u32 %v1038, %v1039
    %v1041 = vshll.u32 2131351028, %v1032
    %v1042 = vshrl.u32 2102212464, %v1033
    %v1043 = vor.u32 %v1041, %v1042
    %v1044 = vshll.u32 2102212464, %v1032
    %v1045 = vshrl.u32 920167782, %v1033
    %v1046 = vor.u32 %v1044, %v1045
    %v1047 = vshll.u32 920167782, %v1032
    %v1048 = vshrl.u32 1326507024, %v1033
    %v1049 = vor.u32 %v1047, %v1048
    %vm1050 = vcmp.lt.s32.totalorder %v1031, 1
    %vm1051 = vcmp.lt.s32.totalorder %v1031, 2
    %vm1052 = vcmp.lt.s32.totalorder %v1031, 3
    %vm1053 = vcmp.lt.s32.totalorder %v1031, 4
    %v1054 = vsel %vm1050, %v1034, %v1037
    %v1055 = vsel %vm1053, %v1043, 2102212464
    %v1056 = vsel %vm1052, %v1040, %v1055
    %v1057 = vsel %vm1051, %v1054, %v1056
    %v1058 = vsel %vm1050, %v1037, %v1040
    %v1059 = vsel %vm1053, %v1046, 920167782
    %v1060 = vsel %vm1052, %v1043, %v1059
    %v1061 = vsel %vm1051, %v1058, %v1060
    %v1062 = vsel %vm1050, %v1040, %v1043
    %v1063 = vsel %vm1053, %v1049, 1326507024
    %v1064 = vsel %vm1052, %v1046, %v1063
    %v1065 = vsel %vm1051, %v1062, %v1064
    %v1066 = vshll.u32 %v1026, 8
    %v1067 = vand.u32 %v1066, 65535
    %v1068 = vshrl.u32 %v1066, 16
    %v1069 = vand.u32 %v1065, 65535
    %v1070 = vshrl.u32 %v1065, 16
    %v1071 = vmul.u32 %v1067, %v1069
    %v1072 = vmul.u32 %v1067, %v1070
    %v1073 = vmul.u32 %v1068, %v1069
    %v1074 = vmul.u32 %v1068, %v1070
    %v1075 = vshll.u32 %v1072, 16
    %v1076 = vshrl.u32 %v1072, 16
    %v1077 = vshll.u32 %v1073, 16
    %v1078 = vshrl.u32 %v1073, 16
    %vm1079 = vc.u32 %v1071, %v1075
    %v1080 = vsel %vm1079, 1, 0
    %v1081 = vadd.s32 %v1071, %v1075
    %v1082 = vadd.s32 %v1074, %v1080
    %vm1083 = vc.u32 %v1081, %v1077
    %v1084 = vsel %vm1083, 1, 0
    %v1085 = vadd.s32 %v1081, %v1077
    %v1086 = vadd.s32 %v1082, %v1084
    %v1087 = vadd.s32 %v1086, %v1076
    %v1088 = vadd.s32 %v1087, %v1078
    %v1089 = vand.u32 %v1066, 65535
    %v1090 = vshrl.u32 %v1066, 16
    %v1091 = vand.u32 %v1061, 65535
    %v1092 = vshrl.u32 %v1061, 16
    %v1093 = vmul.u32 %v1089, %v1091
    %v1094 = vmul.u32 %v1089, %v1092
    %v1095 = vmul.u32 %v1090, %v1091
    %v1096 = vmul.u32 %v1090, %v1092
    %v1097 = vshll.u32 %v1094, 16
    %v1098 = vshrl.u32 %v1094, 16
    %v1099 = vshll.u32 %v1095, 16
    %v1100 = vshrl.u32 %v1095, 16
    %vm1101 = vc.u32 %v1093, %v1097
    %v1102 = vsel %vm1101, 1, 0
    %v1103 = vadd.s32 %v1093, %v1097
    %v1104 = vadd.s32 %v1096, %v1102
    %vm1105 = vc.u32 %v1103, %v1099
    %v1106 = vsel %vm1105, 1, 0
    %v1107 = vadd.s32 %v1103, %v1099
    %v1108 = vadd.s32 %v1104, %v1106
    %v1109 = vadd.s32 %v1108, %v1098
    %v1110 = vadd.s32 %v1109, %v1100
    %v1111 = vmul.u32 %v1066, %v1057
    %v1112 = vadd.s32 %v1088, %v1107
    %vm1113 = vc.u32 %v1088, %v1107
    %v1114 = vadd.s32 %v1110, 1
    %v1115 = vsel %vm1113, %v1114, %v1110
    %v1116 = vadd.s32 %v1111, %v1115
    %v1117 = vadd.s32 %v1116, 536870912
    %v1118 = vshrl.u32 %v1117, 30
    %v1119 = vshll.u32 %v1118, 30
    %v1120 = vsub.s32 %v1116, %v1119
    %vm1121 = vcmp.lt.s32.totalorder %v1120, 0
    %v1122 = vsub.s32 0, %v1120
    %v1123 = vsel %vm1121, %v1122, %v1120
    %v1124 = vclz %v1123
    %v1125 = vsub.s32 %v1124, 2
    %vm1126 = vcmp.gt.s32.totalorder 0, %v1125
    %v1127 = vsel %vm1126, 0, %v1125
    %v1128 = vsub.s32 32, %v1127
    %v1129 = vshll.u32 %v1120, %v1127
    %v1130 = vshrl.u32 %v1112, %v1128
    %v1131 = vor.u32 %v1129, %v1130
    %v1132 = vsub.s32 4294967266, %v1127
    %v1133 = vadd.s32 %v1132, 127
    %v1134 = vshll.u32 %v1133, 23
    %v1135 = vor.u32 4788187, %v1134
    %v1136 = vand.u32 2147483647, %v1135
    %v1138 = vcvt.s32.f32 %v1131
    %v1139 = vmul.f32 %v1138, %v1136
    %v1140 = vxor.u32 %v1139, 2147483648
    %v1141 = vsel %vm1020, %v1140, %v1139
    %v1142 = vsub.s32 4, %v1118
    %v1143 = vsel %vm1020, %v1142, %v1118
    %v1144 = vsel %vm1019, %v1017, %v1141
    %v1145 = vsel %vm1019, 0, %v1143
    %v1146 = vmul.f32 %v1144, %v1144
    %v1147 = vmul.f32 %v1146, -0.001358992
    %v1148 = vadd.f32 %v1147, 0.041655596
    %v1149 = vmul.f32 %v1146, %v1148
    %v1150 = vadd.f32 %v1149, -0.4999988
    %v1151 = vmul.f32 %v1146, %v1150
    %v1152 = vadd.f32 1.0, %v1151
    %v1153 = vmul.f32 %v1144, %v1144
    %v1154 = vmul.f32 %v1153, -0.00019511016
    %v1155 = vadd.f32 %v1154, 0.008332121
    %v1156 = vmul.f32 %v1153, %v1155
    %v1157 = vadd.f32 %v1156, -0.16666654
    %v1158 = vmul.f32 %v1153, %v1157
    %v1159 = vadd.f32 %v1158, 1.0
    %v1160 = vmul.f32 %v1159, %v1144
    %vm1161 = vweird.f32 %v1017
    %v1162 = vadd.s32 %v1145, 3
    %v1163 = vand.u32 %v1162, 3
    %vm1164 = vcmp.lt.s32.totalorder %v1163, 2
    %vm1165 = vcmp.eq.s32.totalorder %v1163, 0
    %v1166 = vxor.u32 %v1160, 2147483648
    %v1167 = vsel %vm1165, %v1152, %v1166
    %vm1168 = vcmp.eq.s32.totalorder %v1163, 2
    %v1169 = vxor.u32 %v1152, 2147483648
    %v1170 = vsel %vm1168, %v1169, %v1160
    %v1171 = vsel %vm1164, %v1167, %v1170
    %v1172 = vsel %vm1161, nan, %v1171
    %s1173 = scalar_lea.vmem [#allocation8], 20
    %v1174 = vld [vmem:[%s1173] sm:$0xf]
    %v1176 = vsel %vm388, %v1172, 0
    %v1179 = vsel %vm392, %v1174, 0
    %1181 = vmatpush.msra.mxu0 0.0
    %1182 = vmatpush.msra.mxu0 0.0
    %1183 = vmatpush.msra.mxu0 0.0
    %1184 = vmatpush.msra.mxu0 0.0
    %1185 = vmatpush.msra.mxu0 0.0
    %1186 = vmatpush.msra.mxu0 0.0
    %1187 = vmatpush.msra.mxu0 0.0
    %1188 = vmatpush.msra.mxu0 0.0
    %1189 = vmatpush.msra.mxu0 0.0
    %1190 = vmatpush.msra.mxu0 0.0
    %1191 = vmatpush.msra.mxu0 0.0
    %1192 = vmatpush.msra.mxu0 0.0
    %1193 = vmatpush.msra.mxu0 0.0
    %1194 = vmatpush.msra.mxu0 0.0
    %1195 = vmatpush.msra.mxu0 0.0
    %1196 = vmatpush.msra.mxu0 %v1179
    %1197 = vmatmul.f32.gmra.mxu0 %v1176
    %v1198 = vpop.f32.mrf.mxu0
    %v1199 = vadd.f32 0.0, %v1198
    %1200 = vdwg.mxu0
    %v1201 = vadd.f32 %v1011, %v1199
    %s1202 = sld [smem:[#allocation2 + $0x6]]
    %v1203 = vstv %s1202
    %v1204 = vmul.f32 %v1203, %v62
    %s1205 = sld [smem:[#allocation6 + $0x6]]
    %v1206 = vstv %s1205
    %v1207 = vadd.f32 %v1204, %v1206
    %v1208 = vand.u32 2147483647, %v1207
    %vm1209 = vcmp.le.f32.partialorder %v1208, 0.7853982
    %vm1210 = vcmp.lt.s32.totalorder %v1207, 0
    %v1211 = vand.u32 %v1207, 2139095040
    %v1212 = vshrl.u32 %v1211, 23
    %v1213 = vsub.s32 %v1212, 127
    %v1214 = vand.u32 2147483647, %v1207
    %v1215 = vand.u32 %v1214, 8388607
    %v1216 = vor.u32 %v1215, 8388608
    %v1217 = vsub.s32 0, %v1216
    %v1218 = vadd.s32 %v1213, 1
    %vm1219 = vcmp.gt.s32.totalorder %v1218, 0
    %v1220 = vsel %vm1219, %v1218, 0
    %v1221 = vshrl.u32 %v1220, 5
    %v1222 = vand.u32 %v1220, 31
    %v1223 = vsub.s32 32, %v1222
    %v1224 = vshrl.u32 683565275, %v1223
    %v1225 = vshll.u32 683565275, %v1222
    %v1226 = vshrl.u32 2475754826, %v1223
    %v1227 = vor.u32 %v1225, %v1226
    %v1228 = vshll.u32 2475754826, %v1222
    %v1229 = vshrl.u32 2131351028, %v1223
    %v1230 = vor.u32 %v1228, %v1229
    %v1231 = vshll.u32 2131351028, %v1222
    %v1232 = vshrl.u32 2102212464, %v1223
    %v1233 = vor.u32 %v1231, %v1232
    %v1234 = vshll.u32 2102212464, %v1222
    %v1235 = vshrl.u32 920167782, %v1223
    %v1236 = vor.u32 %v1234, %v1235
    %v1237 = vshll.u32 920167782, %v1222
    %v1238 = vshrl.u32 1326507024, %v1223
    %v1239 = vor.u32 %v1237, %v1238
    %vm1240 = vcmp.lt.s32.totalorder %v1221, 1
    %vm1241 = vcmp.lt.s32.totalorder %v1221, 2
    %vm1242 = vcmp.lt.s32.totalorder %v1221, 3
    %vm1243 = vcmp.lt.s32.totalorder %v1221, 4
    %v1244 = vsel %vm1240, %v1224, %v1227
    %v1245 = vsel %vm1243, %v1233, 2102212464
    %v1246 = vsel %vm1242, %v1230, %v1245
    %v1247 = vsel %vm1241, %v1244, %v1246
    %v1248 = vsel %vm1240, %v1227, %v1230
    %v1249 = vsel %vm1243, %v1236, 920167782
    %v1250 = vsel %vm1242, %v1233, %v1249
    %v1251 = vsel %vm1241, %v1248, %v1250
    %v1252 = vsel %vm1240, %v1230, %v1233
    %v1253 = vsel %vm1243, %v1239, 1326507024
    %v1254 = vsel %vm1242, %v1236, %v1253
    %v1255 = vsel %vm1241, %v1252, %v1254
    %v1256 = vshll.u32 %v1216, 8
    %v1257 = vand.u32 %v1256, 65535
    %v1258 = vshrl.u32 %v1256, 16
    %v1259 = vand.u32 %v1255, 65535
    %v1260 = vshrl.u32 %v1255, 16
    %v1261 = vmul.u32 %v1257, %v1259
    %v1262 = vmul.u32 %v1257, %v1260
    %v1263 = vmul.u32 %v1258, %v1259
    %v1264 = vmul.u32 %v1258, %v1260
    %v1265 = vshll.u32 %v1262, 16
    %v1266 = vshrl.u32 %v1262, 16
    %v1267 = vshll.u32 %v1263, 16
    %v1268 = vshrl.u32 %v1263, 16
    %vm1269 = vc.u32 %v1261, %v1265
    %v1270 = vsel %vm1269, 1, 0
    %v1271 = vadd.s32 %v1261, %v1265
    %v1272 = vadd.s32 %v1264, %v1270
    %vm1273 = vc.u32 %v1271, %v1267
    %v1274 = vsel %vm1273, 1, 0
    %v1275 = vadd.s32 %v1271, %v1267
    %v1276 = vadd.s32 %v1272, %v1274
    %v1277 = vadd.s32 %v1276, %v1266
    %v1278 = vadd.s32 %v1277, %v1268
    %v1279 = vand.u32 %v1256, 65535
    %v1280 = vshrl.u32 %v1256, 16
    %v1281 = vand.u32 %v1251, 65535
    %v1282 = vshrl.u32 %v1251, 16
    %v1283 = vmul.u32 %v1279, %v1281
    %v1284 = vmul.u32 %v1279, %v1282
    %v1285 = vmul.u32 %v1280, %v1281
    %v1286 = vmul.u32 %v1280, %v1282
    %v1287 = vshll.u32 %v1284, 16
    %v1288 = vshrl.u32 %v1284, 16
    %v1289 = vshll.u32 %v1285, 16
    %v1290 = vshrl.u32 %v1285, 16
    %vm1291 = vc.u32 %v1283, %v1287
    %v1292 = vsel %vm1291, 1, 0
    %v1293 = vadd.s32 %v1283, %v1287
    %v1294 = vadd.s32 %v1286, %v1292
    %vm1295 = vc.u32 %v1293, %v1289
    %v1296 = vsel %vm1295, 1, 0
    %v1297 = vadd.s32 %v1293, %v1289
    %v1298 = vadd.s32 %v1294, %v1296
    %v1299 = vadd.s32 %v1298, %v1288
    %v1300 = vadd.s32 %v1299, %v1290
    %v1301 = vmul.u32 %v1256, %v1247
    %v1302 = vadd.s32 %v1278, %v1297
    %vm1303 = vc.u32 %v1278, %v1297
    %v1304 = vadd.s32 %v1300, 1
    %v1305 = vsel %vm1303, %v1304, %v1300
    %v1306 = vadd.s32 %v1301, %v1305
    %v1307 = vadd.s32 %v1306, 536870912
    %v1308 = vshrl.u32 %v1307, 30
    %v1309 = vshll.u32 %v1308, 30
    %v1310 = vsub.s32 %v1306, %v1309
    %vm1311 = vcmp.lt.s32.totalorder %v1310, 0
    %v1312 = vsub.s32 0, %v1310
    %v1313 = vsel %vm1311, %v1312, %v1310
    %v1314 = vclz %v1313
    %v1315 = vsub.s32 %v1314, 2
    %vm1316 = vcmp.gt.s32.totalorder 0, %v1315
    %v1317 = vsel %vm1316, 0, %v1315
    %v1318 = vsub.s32 32, %v1317
    %v1319 = vshll.u32 %v1310, %v1317
    %v1320 = vshrl.u32 %v1302, %v1318
    %v1321 = vor.u32 %v1319, %v1320
    %v1322 = vsub.s32 4294967266, %v1317
    %v1323 = vadd.s32 %v1322, 127
    %v1324 = vshll.u32 %v1323, 23
    %v1325 = vor.u32 4788187, %v1324
    %v1326 = vand.u32 2147483647, %v1325
    %v1328 = vcvt.s32.f32 %v1321
    %v1329 = vmul.f32 %v1328, %v1326
    %v1330 = vxor.u32 %v1329, 2147483648
    %v1331 = vsel %vm1210, %v1330, %v1329
    %v1332 = vsub.s32 4, %v1308
    %v1333 = vsel %vm1210, %v1332, %v1308
    %v1334 = vsel %vm1209, %v1207, %v1331
    %v1335 = vsel %vm1209, 0, %v1333
    %v1336 = vmul.f32 %v1334, %v1334
    %v1337 = vmul.f32 %v1336, -0.001358992
    %v1338 = vadd.f32 %v1337, 0.041655596
    %v1339 = vmul.f32 %v1336, %v1338
    %v1340 = vadd.f32 %v1339, -0.4999988
    %v1341 = vmul.f32 %v1336, %v1340
    %v1342 = vadd.f32 1.0, %v1341
    %v1343 = vmul.f32 %v1334, %v1334
    %v1344 = vmul.f32 %v1343, -0.00019511016
    %v1345 = vadd.f32 %v1344, 0.008332121
    %v1346 = vmul.f32 %v1343, %v1345
    %v1347 = vadd.f32 %v1346, -0.16666654
    %v1348 = vmul.f32 %v1343, %v1347
    %v1349 = vadd.f32 %v1348, 1.0
    %v1350 = vmul.f32 %v1349, %v1334
    %vm1351 = vweird.f32 %v1207
    %v1352 = vadd.s32 %v1335, 3
    %v1353 = vand.u32 %v1352, 3
    %vm1354 = vcmp.lt.s32.totalorder %v1353, 2
    %vm1355 = vcmp.eq.s32.totalorder %v1353, 0
    %v1356 = vxor.u32 %v1350, 2147483648
    %v1357 = vsel %vm1355, %v1342, %v1356
    %vm1358 = vcmp.eq.s32.totalorder %v1353, 2
    %v1359 = vxor.u32 %v1342, 2147483648
    %v1360 = vsel %vm1358, %v1359, %v1350
    %v1361 = vsel %vm1354, %v1357, %v1360
    %v1362 = vsel %vm1351, nan, %v1361
    %s1363 = scalar_lea.vmem [#allocation8], 24
    %v1364 = vld [vmem:[%s1363] sm:$0xf]
    %v1366 = vsel %vm388, %v1362, 0
    %v1369 = vsel %vm392, %v1364, 0
    %1371 = vmatpush.msra.mxu0 0.0
    %1372 = vmatpush.msra.mxu0 0.0
    %1373 = vmatpush.msra.mxu0 0.0
    %1374 = vmatpush.msra.mxu0 0.0
    %1375 = vmatpush.msra.mxu0 0.0
    %1376 = vmatpush.msra.mxu0 0.0
    %1377 = vmatpush.msra.mxu0 0.0
    %1378 = vmatpush.msra.mxu0 0.0
    %1379 = vmatpush.msra.mxu0 0.0
    %1380 = vmatpush.msra.mxu0 0.0
    %1381 = vmatpush.msra.mxu0 0.0
    %1382 = vmatpush.msra.mxu0 0.0
    %1383 = vmatpush.msra.mxu0 0.0
    %1384 = vmatpush.msra.mxu0 0.0
    %1385 = vmatpush.msra.mxu0 0.0
    %1386 = vmatpush.msra.mxu0 %v1369
    %1387 = vmatmul.f32.gmra.mxu0 %v1366
    %v1388 = vpop.f32.mrf.mxu0
    %v1389 = vadd.f32 0.0, %v1388
    %1390 = vdwg.mxu0
    %v1391 = vadd.f32 %v1201, %v1389
    %s1392 = sld [smem:[#allocation2 + $0x7]]
    %v1393 = vstv %s1392
    %v1394 = vmul.f32 %v1393, %v62
    %s1395 = sld [smem:[#allocation6 + $0x7]]
    %v1396 = vstv %s1395
    %v1397 = vadd.f32 %v1394, %v1396
    %v1398 = vand.u32 2147483647, %v1397
    %vm1399 = vcmp.le.f32.partialorder %v1398, 0.7853982
    %vm1400 = vcmp.lt.s32.totalorder %v1397, 0
    %v1401 = vand.u32 %v1397, 2139095040
    %v1402 = vshrl.u32 %v1401, 23
    %v1403 = vsub.s32 %v1402, 127
    %v1404 = vand.u32 2147483647, %v1397
    %v1405 = vand.u32 %v1404, 8388607
    %v1406 = vor.u32 %v1405, 8388608
    %v1407 = vsub.s32 0, %v1406
    %v1408 = vadd.s32 %v1403, 1
    %vm1409 = vcmp.gt.s32.totalorder %v1408, 0
    %v1410 = vsel %vm1409, %v1408, 0
    %v1411 = vshrl.u32 %v1410, 5
    %v1412 = vand.u32 %v1410, 31
    %v1413 = vsub.s32 32, %v1412
    %v1414 = vshrl.u32 683565275, %v1413
    %v1415 = vshll.u32 683565275, %v1412
    %v1416 = vshrl.u32 2475754826, %v1413
    %v1417 = vor.u32 %v1415, %v1416
    %v1418 = vshll.u32 2475754826, %v1412
    %v1419 = vshrl.u32 2131351028, %v1413
    %v1420 = vor.u32 %v1418, %v1419
    %v1421 = vshll.u32 2131351028, %v1412
    %v1422 = vshrl.u32 2102212464, %v1413
    %v1423 = vor.u32 %v1421, %v1422
    %v1424 = vshll.u32 2102212464, %v1412
    %v1425 = vshrl.u32 920167782, %v1413
    %v1426 = vor.u32 %v1424, %v1425
    %v1427 = vshll.u32 920167782, %v1412
    %v1428 = vshrl.u32 1326507024, %v1413
    %v1429 = vor.u32 %v1427, %v1428
    %vm1430 = vcmp.lt.s32.totalorder %v1411, 1
    %vm1431 = vcmp.lt.s32.totalorder %v1411, 2
    %vm1432 = vcmp.lt.s32.totalorder %v1411, 3
    %vm1433 = vcmp.lt.s32.totalorder %v1411, 4
    %v1434 = vsel %vm1430, %v1414, %v1417
    %v1435 = vsel %vm1433, %v1423, 2102212464
    %v1436 = vsel %vm1432, %v1420, %v1435
    %v1437 = vsel %vm1431, %v1434, %v1436
    %v1438 = vsel %vm1430, %v1417, %v1420
    %v1439 = vsel %vm1433, %v1426, 920167782
    %v1440 = vsel %vm1432, %v1423, %v1439
    %v1441 = vsel %vm1431, %v1438, %v1440
    %v1442 = vsel %vm1430, %v1420, %v1423
    %v1443 = vsel %vm1433, %v1429, 1326507024
    %v1444 = vsel %vm1432, %v1426, %v1443
    %v1445 = vsel %vm1431, %v1442, %v1444
    %v1446 = vshll.u32 %v1406, 8
    %v1447 = vand.u32 %v1446, 65535
    %v1448 = vshrl.u32 %v1446, 16
    %v1449 = vand.u32 %v1445, 65535
    %v1450 = vshrl.u32 %v1445, 16
    %v1451 = vmul.u32 %v1447, %v1449
    %v1452 = vmul.u32 %v1447, %v1450
    %v1453 = vmul.u32 %v1448, %v1449
    %v1454 = vmul.u32 %v1448, %v1450
    %v1455 = vshll.u32 %v1452, 16
    %v1456 = vshrl.u32 %v1452, 16
    %v1457 = vshll.u32 %v1453, 16
    %v1458 = vshrl.u32 %v1453, 16
    %vm1459 = vc.u32 %v1451, %v1455
    %v1460 = vsel %vm1459, 1, 0
    %v1461 = vadd.s32 %v1451, %v1455
    %v1462 = vadd.s32 %v1454, %v1460
    %vm1463 = vc.u32 %v1461, %v1457
    %v1464 = vsel %vm1463, 1, 0
    %v1465 = vadd.s32 %v1461, %v1457
    %v1466 = vadd.s32 %v1462, %v1464
    %v1467 = vadd.s32 %v1466, %v1456
    %v1468 = vadd.s32 %v1467, %v1458
    %v1469 = vand.u32 %v1446, 65535
    %v1470 = vshrl.u32 %v1446, 16
    %v1471 = vand.u32 %v1441, 65535
    %v1472 = vshrl.u32 %v1441, 16
    %v1473 = vmul.u32 %v1469, %v1471
    %v1474 = vmul.u32 %v1469, %v1472
    %v1475 = vmul.u32 %v1470, %v1471
    %v1476 = vmul.u32 %v1470, %v1472
    %v1477 = vshll.u32 %v1474, 16
    %v1478 = vshrl.u32 %v1474, 16
    %v1479 = vshll.u32 %v1475, 16
    %v1480 = vshrl.u32 %v1475, 16
    %vm1481 = vc.u32 %v1473, %v1477
    %v1482 = vsel %vm1481, 1, 0
    %v1483 = vadd.s32 %v1473, %v1477
    %v1484 = vadd.s32 %v1476, %v1482
    %vm1485 = vc.u32 %v1483, %v1479
    %v1486 = vsel %vm1485, 1, 0
    %v1487 = vadd.s32 %v1483, %v1479
    %v1488 = vadd.s32 %v1484, %v1486
    %v1489 = vadd.s32 %v1488, %v1478
    %v1490 = vadd.s32 %v1489, %v1480
    %v1491 = vmul.u32 %v1446, %v1437
    %v1492 = vadd.s32 %v1468, %v1487
    %vm1493 = vc.u32 %v1468, %v1487
    %v1494 = vadd.s32 %v1490, 1
    %v1495 = vsel %vm1493, %v1494, %v1490
    %v1496 = vadd.s32 %v1491, %v1495
    %v1497 = vadd.s32 %v1496, 536870912
    %v1498 = vshrl.u32 %v1497, 30
    %v1499 = vshll.u32 %v1498, 30
    %v1500 = vsub.s32 %v1496, %v1499
    %vm1501 = vcmp.lt.s32.totalorder %v1500, 0
    %v1502 = vsub.s32 0, %v1500
    %v1503 = vsel %vm1501, %v1502, %v1500
    %v1504 = vclz %v1503
    %v1505 = vsub.s32 %v1504, 2
    %vm1506 = vcmp.gt.s32.totalorder 0, %v1505
    %v1507 = vsel %vm1506, 0, %v1505
    %v1508 = vsub.s32 32, %v1507
    %v1509 = vshll.u32 %v1500, %v1507
    %v1510 = vshrl.u32 %v1492, %v1508
    %v1511 = vor.u32 %v1509, %v1510
    %v1512 = vsub.s32 4294967266, %v1507
    %v1513 = vadd.s32 %v1512, 127
    %v1514 = vshll.u32 %v1513, 23
    %v1515 = vor.u32 4788187, %v1514
    %v1516 = vand.u32 2147483647, %v1515
    %v1518 = vcvt.s32.f32 %v1511
    %v1519 = vmul.f32 %v1518, %v1516
    %v1520 = vxor.u32 %v1519, 2147483648
    %v1521 = vsel %vm1400, %v1520, %v1519
    %v1522 = vsub.s32 4, %v1498
    %v1523 = vsel %vm1400, %v1522, %v1498
    %v1524 = vsel %vm1399, %v1397, %v1521
    %v1525 = vsel %vm1399, 0, %v1523
    %v1526 = vmul.f32 %v1524, %v1524
    %v1527 = vmul.f32 %v1526, -0.001358992
    %v1528 = vadd.f32 %v1527, 0.041655596
    %v1529 = vmul.f32 %v1526, %v1528
    %v1530 = vadd.f32 %v1529, -0.4999988
    %v1531 = vmul.f32 %v1526, %v1530
    %v1532 = vadd.f32 1.0, %v1531
    %v1533 = vmul.f32 %v1524, %v1524
    %v1534 = vmul.f32 %v1533, -0.00019511016
    %v1535 = vadd.f32 %v1534, 0.008332121
    %v1536 = vmul.f32 %v1533, %v1535
    %v1537 = vadd.f32 %v1536, -0.16666654
    %v1538 = vmul.f32 %v1533, %v1537
    %v1539 = vadd.f32 %v1538, 1.0
    %v1540 = vmul.f32 %v1539, %v1524
    %vm1541 = vweird.f32 %v1397
    %v1542 = vadd.s32 %v1525, 3
    %v1543 = vand.u32 %v1542, 3
    %vm1544 = vcmp.lt.s32.totalorder %v1543, 2
    %vm1545 = vcmp.eq.s32.totalorder %v1543, 0
    %v1546 = vxor.u32 %v1540, 2147483648
    %v1547 = vsel %vm1545, %v1532, %v1546
    %vm1548 = vcmp.eq.s32.totalorder %v1543, 2
    %v1549 = vxor.u32 %v1532, 2147483648
    %v1550 = vsel %vm1548, %v1549, %v1540
    %v1551 = vsel %vm1544, %v1547, %v1550
    %v1552 = vsel %vm1541, nan, %v1551
    %s1553 = scalar_lea.vmem [#allocation8], 28
    %v1554 = vld [vmem:[%s1553] sm:$0xf]
    %v1556 = vsel %vm388, %v1552, 0
    %v1559 = vsel %vm392, %v1554, 0
    %1561 = vmatpush.msra.mxu0 0.0
    %1562 = vmatpush.msra.mxu0 0.0
    %1563 = vmatpush.msra.mxu0 0.0
    %1564 = vmatpush.msra.mxu0 0.0
    %1565 = vmatpush.msra.mxu0 0.0
    %1566 = vmatpush.msra.mxu0 0.0
    %1567 = vmatpush.msra.mxu0 0.0
    %1568 = vmatpush.msra.mxu0 0.0
    %1569 = vmatpush.msra.mxu0 0.0
    %1570 = vmatpush.msra.mxu0 0.0
    %1571 = vmatpush.msra.mxu0 0.0
    %1572 = vmatpush.msra.mxu0 0.0
    %1573 = vmatpush.msra.mxu0 0.0
    %1574 = vmatpush.msra.mxu0 0.0
    %1575 = vmatpush.msra.mxu0 0.0
    %1576 = vmatpush.msra.mxu0 %v1559
    %1577 = vmatmul.f32.gmra.mxu0 %v1556
    %v1578 = vpop.f32.mrf.mxu0
    %v1579 = vadd.f32 0.0, %v1578
    %1580 = vdwg.mxu0
    %v1581 = vadd.f32 %v1391, %v1579
    %v1582 = vld [vmem:[%s4] sm:$0x1]
    %v1584 = vperm.slane %v1582, 0
    %v1586 = vadd.f32 %v1581, %v1584
    %vm1587 = vcmask 130048
    %1588 = vst.msk [vmem:[#allocation9] sm:$0xff] %vm1587, %v1586
    // Predicated region
    $region34: #{tpu_custom_call.1} parent=1 // pred_check
      _
    $region35: #{tpu_custom_call.1} parent=1 // pred_check_branch
      %1590 = sbr.rel (0) target = $region37
    $region36: #{tpu_custom_call.1} parent=1 // pred_region
      %1592 = vsyncadd [#allocation4], 0
      %s1594 = sshll.u32 [#allocation9], 4
      %s1595 = int_to_ptr.vmem [resolvable:$true] %s1594
      %s1596 = sshll.u32 %s5, 4
      %s1597 = int_to_ptr.hbm [resolvable:$true] %s1596
      %1599 = dma.vmem_to_hbm [thread:$0]  %s1595, 128, %s1597, [#allocation4]
    $region37: #{tpu_custom_call.1} parent=1 // pred_fallthru
      _
    // Predicated region
    $region38: #{tpu_custom_call.1} parent=1 // pred_check
      _
    $region39: #{tpu_custom_call.1} parent=1 // pred_check_branch
      %1601 = sbr.rel (0) target = $region41
    $region40: #{tpu_custom_call.1} parent=1 // pred_region
      %1603 = dma.done [#allocation4], 128
    $region41: #{tpu_custom_call.1} parent=1 // pred_fallthru
      _
    %1604 = vsyncpa [#allocation3], 1
    %1605 = vsyncpa [#allocation4], 1
    %1606 = vsyncpa [#allocation5], 1
    %1607 = vsyncpa [#allocation7], 1

</llo_original>
